<compile_context>
chip_gen: v7x
topology: tpu7x:2x2x1
jax: 0.10.0
libtpu: 0.0.40
codegen_flags: <defaults>
</compile_context>

<pallas_src>
import functools

import jax
import jax.numpy as jnp
from jax.experimental import pallas as pl
from jax.experimental.pallas import tpu as pltpu


def conv_block_kernel(x_ref, b1m_ref, g1_ref, be1_ref, b2m_ref, g2_ref, be2_ref,
                      o_ref, z1_s, z2_s, pad_s, s1_s, s2_s,
                      *, N, H, W, Cout, eps):
    """Grid = (phase, sample n).

    phase 0: conv1(x[n])              -> z1_s[n],  accumulate lane-wise stats1
    phase 1: BN1-affine, pad, conv2   -> z2_s[n],  accumulate lane-wise stats2
    phase 2: BN2-affine + ReLU        -> o_ref

    x_ref   : (1, H+2, W*Cin)   H-halo-padded input sample (channel-fastest lanes)
    b*m_ref : (3, K, W*Cout)    banded conv weights, bf16 (one matrix per ky tap)
    g*/be*  : (1, W*Cout)       BN gamma/beta tiled along W (lane-dense), f32
    o_ref   : (H, W*Cout)       lane-dense output block for sample n
    """
    phase = pl.program_id(0)
    n = pl.program_id(1)
    L = W * Cout
    inv_cnt = 1.0 / float(N * H * W)

    def conv3(tap, wm_ref):
        # 3 MXU matmuls (one per ky row tap); kx taps, channel contraction and
        # W zero-padding are folded into the banded weight.  bf16 operands,
        # f32 accumulation on the MXU.
        acc = jnp.dot(tap(0), wm_ref[0], preferred_element_type=jnp.float32)
        for ky in (1, 2):
            acc = acc + jnp.dot(tap(ky), wm_ref[ky],
                                preferred_element_type=jnp.float32)
        return acc                                            # (H, L) f32

    def channel_sum(v):
        # v: (1, L).  Sum the W lane positions of each channel (lane stride
        # Cout) with log2(W) XLU lane rolls; leaves each channel's total
        # broadcast across that channel's W lanes.  Needs power-of-two W, Cout.
        t = v
        s = L // 2
        while s >= Cout:
            t = t + pltpu.roll(t, s, axis=1)
            s //= 2
        return t

    def bn_affine(stats_ref, gamma, beta):
        # Finalize partial sums into the folded affine y = a*z + b (all f32).
        s1 = channel_sum(stats_ref[0:1, :])
        s2 = channel_sum(stats_ref[1:2, :])
        mean = s1 * inv_cnt
        var = s2 * inv_cnt - mean * mean      # one-pass E[z^2]-E[z]^2 (f32)
        a = gamma * jax.lax.rsqrt(var + eps)
        b = beta - a * mean
        return a, b

    def accumulate_stats(stats_ref, z):
        stats_ref[0:1, :] += jnp.sum(z, axis=0, keepdims=True)
        stats_ref[1:2, :] += jnp.sum(z * z, axis=0, keepdims=True)

    # ------------- phase 0: conv1, raw z1 -> scratch, partial stats1 --------
    @pl.when(phase == 0)
    def _():
        @pl.when(n == 0)
        def _():
            s1_s[...] = jnp.zeros_like(s1_s)
            s2_s[...] = jnp.zeros_like(s2_s)
        z1 = conv3(lambda ky: x_ref[0, ky:ky + H, :].astype(jnp.bfloat16),
                   b1m_ref)
        z1_s[n] = z1
        accumulate_stats(s1_s, z1)

    # ------- phase 1: BN1 affine, halo-pad, conv2, partial stats2 -----------
    @pl.when(phase == 1)
    def _():
        a1, b1 = bn_affine(s1_s, g1_ref[...], be1_ref[...])
        y1 = a1 * z1_s[n] + b1                               # (H, L) f32
        # Zero only the two halo rows; interior store is full-lane-width.
        pad_s[0:1, :] = jnp.zeros((1, L), jnp.float32)
        pad_s[H + 1:H + 2, :] = jnp.zeros((1, L), jnp.float32)
        pad_s[1:H + 1, :] = y1
        z2 = conv3(lambda ky: pad_s[ky:ky + H, :].astype(jnp.bfloat16),
                   b2m_ref)
        z2_s[n] = z2
        accumulate_stats(s2_s, z2)

    # ------------- phase 2: BN2 affine + ReLU -> output ---------------------
    @pl.when(phase == 2)
    def _():
        a2, b2 = bn_affine(s2_s, g2_ref[...], be2_ref[...])
        o_ref[...] = jnp.maximum(a2 * z2_s[n] + b2, 0.0)


def lower_conv_weight(w_oihw, width):
    """Lower an (O, I, 3, 3) conv weight to (3, width*I, width*O) banded matrices.

    B[ky][wp*I + ci, w*O + co] = w[co, ci, ky, kx] with kx = wp - w + 1 when that
    lies in {0,1,2}, else 0.  Folds kx taps, channel contraction and the width
    zero-padding into a single matmul operand (trace-time layout plumbing).
    """
    w = jnp.transpose(w_oihw, (2, 3, 1, 0)).astype(jnp.float32)  # (ky, kx, I, O)
    I, O = w.shape[2], w.shape[3]
    mats = []
    for ky in range(3):
        m = jnp.zeros((width * I, width * O), jnp.float32)
        for kx in range(3):
            shift = jnp.eye(width, k=1 - kx, dtype=jnp.float32)  # [wp, w]
            m = m + jnp.kron(shift, w[ky, kx])
        mats.append(m)
    return jnp.stack(mats)


def conv_block_forward(x_nchw, params, eps=1e-5):
    """Pallas implementation of conv_block.forward (NCHW in, NCHW out)."""
    N, Cin, H, W = x_nchw.shape
    Cout = params["w1_oihw"].shape[0]
    Lin, L = W * Cin, W * Cout
    assert (W & (W - 1)) == 0 and (Cout & (Cout - 1)) == 0, \
        "roll-based per-channel reduction assumes power-of-two W and Cout"
    assert H % 8 == 0, "output row block must satisfy the (8,128) tiling rule"

    # Trace-time layout plumbing: NCHW -> H-halo-padded, channel-fastest lanes.
    x = jnp.transpose(x_nchw, (0, 2, 3, 1)).astype(jnp.float32)      # NHWC
    x = jnp.pad(x, ((0, 0), (1, 1), (0, 0), (0, 0)))                 # pad H only
    x3d = x.reshape(N, H + 2, Lin)

    # Banded weights shipped in bf16 (MXU-native on v6e/v7x, half the resident
    # VMEM / DMA bytes); BN vectors stay f32.
    b1m = lower_conv_weight(params["w1_oihw"], W).astype(jnp.bfloat16)
    b2m = lower_conv_weight(params["w2_oihw"], W).astype(jnp.bfloat16)
    g1 = jnp.tile(params["g1"], W).reshape(1, L).astype(jnp.float32)
    be1 = jnp.tile(params["be1"], W).reshape(1, L).astype(jnp.float32)
    g2 = jnp.tile(params["g2"], W).reshape(1, L).astype(jnp.float32)
    be2 = jnp.tile(params["be2"], W).reshape(1, L).astype(jnp.float32)

    # Grid = (phase, sample).  Both axes "arbitrary": BN partial sums and the
    # z1/z2 intermediates are carried in VMEM scratch across grid steps
    # (sequential order required); see TODO(synk) re megacore.
    grid = (3, N)
    const3 = lambda p, n: (0, 0, 0)
    const2 = lambda p, n: (0, 0)

    # VMEM footprint: x blocks 2x4.5 KiB, weights 48+96 KiB (bf16, resident),
    # z1/z2 scratch 2x16 KiB, pad 9 KiB, out blocks 2x8 KiB, stats ~1 KiB
    # => well under 0.5 MiB; the explicit limit leaves generous headroom and
    # fits v7x's smaller (64 MiB physical / 32 MiB default scoped) VMEM.
    out2d = pl.pallas_call(
        functools.partial(conv_block_kernel, N=N, H=H, W=W, Cout=Cout, eps=eps),
        out_shape=jax.ShapeDtypeStruct((N * H, L), jnp.float32),
        grid_spec=pltpu.PrefetchScalarGridSpec(
            num_scalar_prefetch=0,
            grid=grid,
            in_specs=[
                # per-sample activation block (pipelined as n advances)
                pl.BlockSpec((1, H + 2, Lin), lambda p, n: (n, 0, 0)),
                # grid-invariant operands: constant block index => DMA'd once
                pl.BlockSpec((3, Lin, L), const3),   # b1m
                pl.BlockSpec((1, L), const2),        # gamma1
                pl.BlockSpec((1, L), const2),        # beta1
                pl.BlockSpec((3, L, L), const3),     # b2m
                pl.BlockSpec((1, L), const2),        # gamma2
                pl.BlockSpec((1, L), const2),        # beta2
            ],
            out_specs=pl.BlockSpec((H, L), lambda p, n: (n, 0)),
            scratch_shapes=[
                pltpu.VMEM((N, H, L), jnp.float32),   # raw conv1 outputs (all n)
                pltpu.VMEM((N, H, L), jnp.float32),   # raw conv2 outputs (all n)
                pltpu.VMEM((H + 2, L), jnp.float32),  # halo-padded BN1 output
                pltpu.VMEM((2, L), jnp.float32),      # stats1: [sum; sum of sq]
                pltpu.VMEM((2, L), jnp.float32),      # stats2: [sum; sum of sq]
            ]),
        compiler_params=pltpu.CompilerParams(
            dimension_semantics=("arbitrary", "arbitrary"),
            vmem_limit_bytes=16 * 1024 * 1024),
    )(x3d, b1m, g1, be1, b2m, g2, be2)

    out = out2d.reshape(N, H, W, Cout)
    return jnp.transpose(out, (0, 3, 1, 2))


def make_params(key, in_c, out_c):
    """Deterministic synthetic parameters (shapes follow nn.Conv2d / nn.BatchNorm2d)."""
    ks = jax.random.split(key, 8)
    return {
        "w1_oihw": 0.1 * jax.random.normal(ks[0], (out_c, in_c, 3, 3), jnp.float32),
        "b1": 0.1 * jax.random.normal(ks[1], (out_c,), jnp.float32),
        "g1": 1.0 + 0.1 * jax.random.normal(ks[2], (out_c,), jnp.float32),
        "be1": 0.1 * jax.random.normal(ks[3], (out_c,), jnp.float32),
        "w2_oihw": 0.1 * jax.random.normal(ks[4], (out_c, out_c, 3, 3), jnp.float32),
        "b2": 0.1 * jax.random.normal(ks[5], (out_c,), jnp.float32),
        "g2": 1.0 + 0.1 * jax.random.normal(ks[6], (out_c,), jnp.float32),
        "be2": 0.1 * jax.random.normal(ks[7], (out_c,), jnp.float32),
    }


def ref_forward(x_nchw, p):
    """Pure-JAX reference mirroring the PyTorch module (training-mode BN, with biases)."""
    def conv(x, w_oihw, b):
        y = jax.lax.conv_general_dilated(
            x, w_oihw, window_strides=(1, 1), padding="SAME",
            dimension_numbers=("NCHW", "OIHW", "NCHW"))
        return y + b[None, :, None, None]

    def bn(x, g, be):
        mean = jnp.mean(x, axis=(0, 2, 3), keepdims=True)
        var = jnp.mean((x - mean) ** 2, axis=(0, 2, 3), keepdims=True)
        return (g[None, :, None, None] * (x - mean) * jax.lax.rsqrt(var + 1e-5)
                + be[None, :, None, None])

    z = bn(conv(x_nchw, p["w1_oihw"], p["b1"]), p["g1"], p["be1"])
    z = bn(conv(z, p["w2_oihw"], p["b2"]), p["g2"], p["be2"])
    return jnp.maximum(z, 0.0)


if __name__ == "__main__":
    key = jax.random.PRNGKey(0)
    k_x, k_p = jax.random.split(key)

    N, in_c, out_c, H, W = 2, 4, 8, 16, 16
    x = jax.random.normal(k_x, (N, in_c, H, W), jnp.float32)
    params = make_params(k_p, in_c, out_c)

    out = jax.block_until_ready(conv_block_forward(x, params))
    ref = jax.block_until_ready(ref_forward(x, params))

    assert out.shape == (N, out_c, H, W)
    max_err = float(jnp.max(jnp.abs(out - ref)))
    rms_err = float(jnp.sqrt(jnp.mean((out - ref) ** 2)))
    # bf16 MXU operands vs an all-f32 reference: expect ~1e-2-scale max error.
    assert max_err < 4e-2, f"max abs err {max_err}"
    assert rms_err < 1e-2, f"rms err {rms_err}"

    # TODO(synk): BatchNorm running-stat (momentum) buffer updates are stateful
    # training bookkeeping and do not affect the forward output; not modeled.
    print("KERNEL_OK")
</pallas_src>

<mosaic_0001>
module attributes {stable_mosaic.version = 11 : i64} {
  func.func @conv_block_kernel(%arg0: i32, %arg1: i32, %arg2: memref<1x18x64xf32, #tpu.memory_space<vmem>>, %arg3: memref<3x64x128xbf16, #tpu.memory_space<vmem>>, %arg4: memref<1x128xf32, #tpu.memory_space<vmem>>, %arg5: memref<1x128xf32, #tpu.memory_space<vmem>>, %arg6: memref<3x128x128xbf16, #tpu.memory_space<vmem>>, %arg7: memref<1x128xf32, #tpu.memory_space<vmem>>, %arg8: memref<1x128xf32, #tpu.memory_space<vmem>>, %arg9: memref<16x128xf32, #tpu.memory_space<vmem>>, %arg10: memref<2x16x128xf32, #tpu.memory_space<vmem>>, %arg11: memref<2x16x128xf32, #tpu.memory_space<vmem>>, %arg12: memref<18x128xf32, #tpu.memory_space<vmem>>, %arg13: memref<2x128xf32, #tpu.memory_space<vmem>>, %arg14: memref<2x128xf32, #tpu.memory_space<vmem>>) attributes {dimension_semantics = [#tpu.dimension_semantics<arbitrary>, #tpu.dimension_semantics<arbitrary>], iteration_bounds = array<i64: 3, 2>, scalar_prefetch = 0 : i64, scratch_operands = 5 : i64, tpu.core_type = #tpu.core_type<tc>, window_params = [{transform_indices = @transform_0, window_bounds = array<i64: 1, 18, 64>}, {pipeline_mode = #tpu.pipeline_mode<synchronous>, transform_indices = @transform_1, window_bounds = array<i64: 3, 64, 128>}, {pipeline_mode = #tpu.pipeline_mode<synchronous>, transform_indices = @transform_2, window_bounds = array<i64: 1, 128>}, {pipeline_mode = #tpu.pipeline_mode<synchronous>, transform_indices = @transform_3, window_bounds = array<i64: 1, 128>}, {pipeline_mode = #tpu.pipeline_mode<synchronous>, transform_indices = @transform_4, window_bounds = array<i64: 3, 128, 128>}, {pipeline_mode = #tpu.pipeline_mode<synchronous>, transform_indices = @transform_5, window_bounds = array<i64: 1, 128>}, {pipeline_mode = #tpu.pipeline_mode<synchronous>, transform_indices = @transform_6, window_bounds = array<i64: 1, 128>}, {transform_indices = @transform_7, window_bounds = array<i64: 16, 128>}]} {
    %c0_i32 = arith.constant 0 : i32
    %0 = arith.cmpi eq, %arg0, %c0_i32 : i32
    %1 = arith.extui %0 : i1 to i32
    %c0_i32_0 = arith.constant 0 : i32
    %2 = arith.cmpi ne, %1, %c0_i32_0 : i32
    scf.if %2 {
      %c0_i32_3 = arith.constant 0 : i32
      %9 = arith.cmpi eq, %arg1, %c0_i32_3 : i32
      %10 = arith.extui %9 : i1 to i32
      %c0_i32_4 = arith.constant 0 : i32
      %11 = arith.cmpi ne, %10, %c0_i32_4 : i32
      scf.if %11 {
        %cst_34 = arith.constant 0.000000e+00 : f32
        %47 = vector.broadcast %cst_34 : f32 to vector<2x128xf32>
        %c0_35 = arith.constant 0 : index
        %c0_36 = arith.constant 0 : index
        %48 = vector.load %arg13[%c0_35, %c0_36] : memref<2x128xf32, #tpu.memory_space<vmem>>, vector<2x128xf32>
        tpu.vector_store %arg13[%c0_35, %c0_36], %47 {strides = array<i32>} : memref<2x128xf32, #tpu.memory_space<vmem>>, vector<2x128xf32>,
        %cst_37 = arith.constant 0.000000e+00 : f32
        %49 = vector.broadcast %cst_37 : f32 to vector<2x128xf32>
        %c0_38 = arith.constant 0 : index
        %c0_39 = arith.constant 0 : index
        %50 = vector.load %arg14[%c0_38, %c0_39] : memref<2x128xf32, #tpu.memory_space<vmem>>, vector<2x128xf32>
        tpu.vector_store %arg14[%c0_38, %c0_39], %49 {strides = array<i32>} : memref<2x128xf32, #tpu.memory_space<vmem>>, vector<2x128xf32>,
      } else {
      }
      %c0 = arith.constant 0 : index
      %c0_5 = arith.constant 0 : index
      %c0_6 = arith.constant 0 : index
      %12 = vector.load %arg2[%c0, %c0_5, %c0_6] : memref<1x18x64xf32, #tpu.memory_space<vmem>>, vector<1x16x64xf32>
      %13 = vector.shape_cast %12 : vector<1x16x64xf32> to vector<16x64xf32>
      %14 = arith.truncf %13 : vector<16x64xf32> to vector<16x64xbf16>
      %c0_7 = arith.constant 0 : index
      %c0_8 = arith.constant 0 : index
      %c0_9 = arith.constant 0 : index
      %15 = vector.load %arg3[%c0_7, %c0_8, %c0_9] : memref<3x64x128xbf16, #tpu.memory_space<vmem>>, vector<1x64x128xbf16>
      %16 = vector.shape_cast %15 : vector<1x64x128xbf16> to vector<64x128xbf16>
      %cst = arith.constant dense<0.000000e+00> : vector<16x128xf32>
      %17 = tpu.matmul %14, %16, %cst {dimension_numbers = #tpu.dot_dimension_numbers<[1], [0], [0], [1], [0, 0, 1, 1], [], []>} : vector<16x64xbf16>, vector<64x128xbf16>, vector<16x128xf32> -> vector<16x128xf32>
      %c0_10 = arith.constant 0 : index
      %c1 = arith.constant 1 : index
      %c0_11 = arith.constant 0 : index
      %18 = vector.load %arg2[%c0_10, %c1, %c0_11] : memref<1x18x64xf32, #tpu.memory_space<vmem>>, vector<1x16x64xf32>
      %19 = vector.shape_cast %18 : vector<1x16x64xf32> to vector<16x64xf32>
      %20 = arith.truncf %19 : vector<16x64xf32> to vector<16x64xbf16>
      %c1_12 = arith.constant 1 : index
      %c0_13 = arith.constant 0 : index
      %c0_14 = arith.constant 0 : index
      %21 = vector.load %arg3[%c1_12, %c0_13, %c0_14] : memref<3x64x128xbf16, #tpu.memory_space<vmem>>, vector<1x64x128xbf16>
      %22 = vector.shape_cast %21 : vector<1x64x128xbf16> to vector<64x128xbf16>
      %cst_15 = arith.constant dense<0.000000e+00> : vector<16x128xf32>
      %23 = tpu.matmul %20, %22, %cst_15 {dimension_numbers = #tpu.dot_dimension_numbers<[1], [0], [0], [1], [0, 0, 1, 1], [], []>} : vector<16x64xbf16>, vector<64x128xbf16>, vector<16x128xf32> -> vector<16x128xf32>
      %24 = arith.addf %17, %23 : vector<16x128xf32>
      %c0_16 = arith.constant 0 : index
      %c2 = arith.constant 2 : index
      %c0_17 = arith.constant 0 : index
      %25 = vector.load %arg2[%c0_16, %c2, %c0_17] : memref<1x18x64xf32, #tpu.memory_space<vmem>>, vector<1x16x64xf32>
      %26 = vector.shape_cast %25 : vector<1x16x64xf32> to vector<16x64xf32>
      %27 = arith.truncf %26 : vector<16x64xf32> to vector<16x64xbf16>
      %c2_18 = arith.constant 2 : index
      %c0_19 = arith.constant 0 : index
      %c0_20 = arith.constant 0 : index
      %28 = vector.load %arg3[%c2_18, %c0_19, %c0_20] : memref<3x64x128xbf16, #tpu.memory_space<vmem>>, vector<1x64x128xbf16>
      %29 = vector.shape_cast %28 : vector<1x64x128xbf16> to vector<64x128xbf16>
      %cst_21 = arith.constant dense<0.000000e+00> : vector<16x128xf32>
      %30 = tpu.matmul %27, %29, %cst_21 {dimension_numbers = #tpu.dot_dimension_numbers<[1], [0], [0], [1], [0, 0, 1, 1], [], []>} : vector<16x64xbf16>, vector<64x128xbf16>, vector<16x128xf32> -> vector<16x128xf32>
      %31 = arith.addf %24, %30 : vector<16x128xf32>
      %32 = arith.index_cast %arg1 : i32 to index
      %c0_22 = arith.constant 0 : index
      %c0_23 = arith.constant 0 : index
      %33 = vector.load %arg10[%32, %c0_22, %c0_23] : memref<2x16x128xf32, #tpu.memory_space<vmem>>, vector<1x16x128xf32>
      %34 = vector.shape_cast %33 : vector<1x16x128xf32> to vector<16x128xf32>
      %35 = vector.shape_cast %31 : vector<16x128xf32> to vector<1x16x128xf32>
      tpu.vector_store %arg10[%32, %c0_22, %c0_23], %35 {strides = array<i32>} : memref<2x16x128xf32, #tpu.memory_space<vmem>>, vector<1x16x128xf32>,
      %c0_24 = arith.constant 0 : index
      %c0_25 = arith.constant 0 : index
      %36 = vector.load %arg13[%c0_24, %c0_25] : memref<2x128xf32, #tpu.memory_space<vmem>>, vector<1x128xf32>
      %cst_26 = arith.constant dense<0.000000e+00> : vector<128xf32>
      %37 = vector.multi_reduction <add>, %31, %cst_26 [0] : vector<16x128xf32> to vector<128xf32>
      %38 = vector.shape_cast %37 : vector<128xf32> to vector<1x128xf32>
      %39 = arith.addf %36, %38 : vector<1x128xf32>
      %c0_27 = arith.constant 0 : index
      %c0_28 = arith.constant 0 : index
      %40 = vector.load %arg13[%c0_27, %c0_28] : memref<2x128xf32, #tpu.memory_space<vmem>>, vector<1x128xf32>
      tpu.vector_store %arg13[%c0_27, %c0_28], %39 {strides = array<i32>} : memref<2x128xf32, #tpu.memory_space<vmem>>, vector<1x128xf32>,
      %c1_29 = arith.constant 1 : index
      %c0_30 = arith.constant 0 : index
      %41 = vector.load %arg13[%c1_29, %c0_30] : memref<2x128xf32, #tpu.memory_space<vmem>>, vector<1x128xf32>
      %42 = arith.mulf %31, %31 : vector<16x128xf32>
      %cst_31 = arith.constant dense<0.000000e+00> : vector<128xf32>
      %43 = vector.multi_reduction <add>, %42, %cst_31 [0] : vector<16x128xf32> to vector<128xf32>
      %44 = vector.shape_cast %43 : vector<128xf32> to vector<1x128xf32>
      %45 = arith.addf %41, %44 : vector<1x128xf32>
      %c1_32 = arith.constant 1 : index
      %c0_33 = arith.constant 0 : index
      %46 = vector.load %arg13[%c1_32, %c0_33] : memref<2x128xf32, #tpu.memory_space<vmem>>, vector<1x128xf32>
      tpu.vector_store %arg13[%c1_32, %c0_33], %45 {strides = array<i32>} : memref<2x128xf32, #tpu.memory_space<vmem>>, vector<1x128xf32>,
    } else {
    }
    %c1_i32 = arith.constant 1 : i32
    %3 = arith.cmpi eq, %arg0, %c1_i32 : i32
    %4 = arith.extui %3 : i1 to i32
    %c0_i32_1 = arith.constant 0 : i32
    %5 = arith.cmpi ne, %4, %c0_i32_1 : i32
    scf.if %5 {
      %c0 = arith.constant 0 : index
      %c0_3 = arith.constant 0 : index
      %9 = vector.load %arg4[%c0, %c0_3] : memref<1x128xf32, #tpu.memory_space<vmem>>, vector<1x128xf32>
      %c0_4 = arith.constant 0 : index
      %c0_5 = arith.constant 0 : index
      %10 = vector.load %arg5[%c0_4, %c0_5] : memref<1x128xf32, #tpu.memory_space<vmem>>, vector<1x128xf32>
      %c0_6 = arith.constant 0 : index
      %c0_7 = arith.constant 0 : index
      %11 = vector.load %arg13[%c0_6, %c0_7] : memref<2x128xf32, #tpu.memory_space<vmem>>, vector<1x128xf32>
      %c64_i32 = arith.constant 64 : i32
      %12 = tpu.dynamic_rotate %11 by %c64_i32 dim 1 : vector<1x128xf32>, i32 -> vector<1x128xf32>
      %13 = arith.addf %11, %12 : vector<1x128xf32>
      %c32_i32 = arith.constant 32 : i32
      %14 = tpu.dynamic_rotate %13 by %c32_i32 dim 1 : vector<1x128xf32>, i32 -> vector<1x128xf32>
      %15 = arith.addf %13, %14 : vector<1x128xf32>
      %c16_i32 = arith.constant 16 : i32
      %16 = tpu.dynamic_rotate %15 by %c16_i32 dim 1 : vector<1x128xf32>, i32 -> vector<1x128xf32>
      %17 = arith.addf %15, %16 : vector<1x128xf32>
      %c8_i32 = arith.constant 8 : i32
      %18 = tpu.dynamic_rotate %17 by %c8_i32 dim 1 : vector<1x128xf32>, i32 -> vector<1x128xf32>
      %19 = arith.addf %17, %18 : vector<1x128xf32>
      %c1 = arith.constant 1 : index
      %c0_8 = arith.constant 0 : index
      %20 = vector.load %arg13[%c1, %c0_8] : memref<2x128xf32, #tpu.memory_space<vmem>>, vector<1x128xf32>
      %c64_i32_9 = arith.constant 64 : i32
      %21 = tpu.dynamic_rotate %20 by %c64_i32_9 dim 1 : vector<1x128xf32>, i32 -> vector<1x128xf32>
      %22 = arith.addf %20, %21 : vector<1x128xf32>
      %c32_i32_10 = arith.constant 32 : i32
      %23 = tpu.dynamic_rotate %22 by %c32_i32_10 dim 1 : vector<1x128xf32>, i32 -> vector<1x128xf32>
      %24 = arith.addf %22, %23 : vector<1x128xf32>
      %c16_i32_11 = arith.constant 16 : i32
      %25 = tpu.dynamic_rotate %24 by %c16_i32_11 dim 1 : vector<1x128xf32>, i32 -> vector<1x128xf32>
      %26 = arith.addf %24, %25 : vector<1x128xf32>
      %c8_i32_12 = arith.constant 8 : i32
      %27 = tpu.dynamic_rotate %26 by %c8_i32_12 dim 1 : vector<1x128xf32>, i32 -> vector<1x128xf32>
      %28 = arith.addf %26, %27 : vector<1x128xf32>
      %cst = arith.constant 0.001953125 : f32
      %29 = vector.broadcast %cst : f32 to vector<1x128xf32>
      %30 = arith.mulf %19, %29 : vector<1x128xf32>
      %cst_13 = arith.constant 0.001953125 : f32
      %31 = vector.broadcast %cst_13 : f32 to vector<1x128xf32>
      %32 = arith.mulf %28, %31 : vector<1x128xf32>
      %33 = arith.mulf %30, %30 : vector<1x128xf32>
      %34 = arith.subf %32, %33 : vector<1x128xf32>
      %cst_14 = arith.constant 9.99999974E-6 : f32
      %35 = vector.broadcast %cst_14 : f32 to vector<1x128xf32>
      %36 = arith.addf %34, %35 : vector<1x128xf32>
      %37 = math.rsqrt %36 : vector<1x128xf32>
      %38 = arith.mulf %9, %37 : vector<1x128xf32>
      %39 = arith.mulf %38, %30 : vector<1x128xf32>
      %40 = arith.subf %10, %39 : vector<1x128xf32>
      %41 = arith.index_cast %arg1 : i32 to index
      %c0_15 = arith.constant 0 : index
      %c0_16 = arith.constant 0 : index
      %42 = vector.load %arg10[%41, %c0_15, %c0_16] : memref<2x16x128xf32, #tpu.memory_space<vmem>>, vector<1x16x128xf32>
      %43 = vector.shape_cast %42 : vector<1x16x128xf32> to vector<16x128xf32>
      %44 = vector.broadcast %38 : vector<1x128xf32> to vector<16x128xf32>
      %45 = arith.mulf %44, %43 : vector<16x128xf32>
      %46 = vector.broadcast %40 : vector<1x128xf32> to vector<16x128xf32>
      %47 = arith.addf %45, %46 : vector<16x128xf32>
      %cst_17 = arith.constant 0.000000e+00 : f32
      %48 = vector.broadcast %cst_17 : f32 to vector<1x128xf32>
      %c0_18 = arith.constant 0 : index
      %c0_19 = arith.constant 0 : index
      %49 = vector.load %arg12[%c0_18, %c0_19] : memref<18x128xf32, #tpu.memory_space<vmem>>, vector<1x128xf32>
      tpu.vector_store %arg12[%c0_18, %c0_19], %48 {strides = array<i32>} : memref<18x128xf32, #tpu.memory_space<vmem>>, vector<1x128xf32>,
      %cst_20 = arith.constant 0.000000e+00 : f32
      %50 = vector.broadcast %cst_20 : f32 to vector<1x128xf32>
      %c17 = arith.constant 17 : index
      %c0_21 = arith.constant 0 : index
      %51 = vector.load %arg12[%c17, %c0_21] : memref<18x128xf32, #tpu.memory_space<vmem>>, vector<1x128xf32>
      tpu.vector_store %arg12[%c17, %c0_21], %50 {strides = array<i32>} : memref<18x128xf32, #tpu.memory_space<vmem>>, vector<1x128xf32>,
      %c1_22 = arith.constant 1 : index
      %c0_23 = arith.constant 0 : index
      %52 = vector.load %arg12[%c1_22, %c0_23] : memref<18x128xf32, #tpu.memory_space<vmem>>, vector<16x128xf32>
      tpu.vector_store %arg12[%c1_22, %c0_23], %47 {strides = array<i32>} : memref<18x128xf32, #tpu.memory_space<vmem>>, vector<16x128xf32>,
      %c0_24 = arith.constant 0 : index
      %c0_25 = arith.constant 0 : index
      %53 = vector.load %arg12[%c0_24, %c0_25] : memref<18x128xf32, #tpu.memory_space<vmem>>, vector<16x128xf32>
      %54 = arith.truncf %53 : vector<16x128xf32> to vector<16x128xbf16>
      %c0_26 = arith.constant 0 : index
      %c0_27 = arith.constant 0 : index
      %c0_28 = arith.constant 0 : index
      %55 = vector.load %arg6[%c0_26, %c0_27, %c0_28] : memref<3x128x128xbf16, #tpu.memory_space<vmem>>, vector<1x128x128xbf16>
      %56 = vector.shape_cast %55 : vector<1x128x128xbf16> to vector<128x128xbf16>
      %cst_29 = arith.constant dense<0.000000e+00> : vector<16x128xf32>
      %57 = tpu.matmul %54, %56, %cst_29 {dimension_numbers = #tpu.dot_dimension_numbers<[1], [0], [0], [1], [0, 0, 1, 1], [], []>} : vector<16x128xbf16>, vector<128x128xbf16>, vector<16x128xf32> -> vector<16x128xf32>
      %c1_30 = arith.constant 1 : index
      %c0_31 = arith.constant 0 : index
      %58 = vector.load %arg12[%c1_30, %c0_31] : memref<18x128xf32, #tpu.memory_space<vmem>>, vector<16x128xf32>
      %59 = arith.truncf %58 : vector<16x128xf32> to vector<16x128xbf16>
      %c1_32 = arith.constant 1 : index
      %c0_33 = arith.constant 0 : index
      %c0_34 = arith.constant 0 : index
      %60 = vector.load %arg6[%c1_32, %c0_33, %c0_34] : memref<3x128x128xbf16, #tpu.memory_space<vmem>>, vector<1x128x128xbf16>
      %61 = vector.shape_cast %60 : vector<1x128x128xbf16> to vector<128x128xbf16>
      %cst_35 = arith.constant dense<0.000000e+00> : vector<16x128xf32>
      %62 = tpu.matmul %59, %61, %cst_35 {dimension_numbers = #tpu.dot_dimension_numbers<[1], [0], [0], [1], [0, 0, 1, 1], [], []>} : vector<16x128xbf16>, vector<128x128xbf16>, vector<16x128xf32> -> vector<16x128xf32>
      %63 = arith.addf %57, %62 : vector<16x128xf32>
      %c2 = arith.constant 2 : index
      %c0_36 = arith.constant 0 : index
      %64 = vector.load %arg12[%c2, %c0_36] : memref<18x128xf32, #tpu.memory_space<vmem>>, vector<16x128xf32>
      %65 = arith.truncf %64 : vector<16x128xf32> to vector<16x128xbf16>
      %c2_37 = arith.constant 2 : index
      %c0_38 = arith.constant 0 : index
      %c0_39 = arith.constant 0 : index
      %66 = vector.load %arg6[%c2_37, %c0_38, %c0_39] : memref<3x128x128xbf16, #tpu.memory_space<vmem>>, vector<1x128x128xbf16>
      %67 = vector.shape_cast %66 : vector<1x128x128xbf16> to vector<128x128xbf16>
      %cst_40 = arith.constant dense<0.000000e+00> : vector<16x128xf32>
      %68 = tpu.matmul %65, %67, %cst_40 {dimension_numbers = #tpu.dot_dimension_numbers<[1], [0], [0], [1], [0, 0, 1, 1], [], []>} : vector<16x128xbf16>, vector<128x128xbf16>, vector<16x128xf32> -> vector<16x128xf32>
      %69 = arith.addf %63, %68 : vector<16x128xf32>
      %70 = arith.index_cast %arg1 : i32 to index
      %c0_41 = arith.constant 0 : index
      %c0_42 = arith.constant 0 : index
      %71 = vector.load %arg11[%70, %c0_41, %c0_42] : memref<2x16x128xf32, #tpu.memory_space<vmem>>, vector<1x16x128xf32>
      %72 = vector.shape_cast %71 : vector<1x16x128xf32> to vector<16x128xf32>
      %73 = vector.shape_cast %69 : vector<16x128xf32> to vector<1x16x128xf32>
      tpu.vector_store %arg11[%70, %c0_41, %c0_42], %73 {strides = array<i32>} : memref<2x16x128xf32, #tpu.memory_space<vmem>>, vector<1x16x128xf32>,
      %c0_43 = arith.constant 0 : index
      %c0_44 = arith.constant 0 : index
      %74 = vector.load %arg14[%c0_43, %c0_44] : memref<2x128xf32, #tpu.memory_space<vmem>>, vector<1x128xf32>
      %cst_45 = arith.constant dense<0.000000e+00> : vector<128xf32>
      %75 = vector.multi_reduction <add>, %69, %cst_45 [0] : vector<16x128xf32> to vector<128xf32>
      %76 = vector.shape_cast %75 : vector<128xf32> to vector<1x128xf32>
      %77 = arith.addf %74, %76 : vector<1x128xf32>
      %c0_46 = arith.constant 0 : index
      %c0_47 = arith.constant 0 : index
      %78 = vector.load %arg14[%c0_46, %c0_47] : memref<2x128xf32, #tpu.memory_space<vmem>>, vector<1x128xf32>
      tpu.vector_store %arg14[%c0_46, %c0_47], %77 {strides = array<i32>} : memref<2x128xf32, #tpu.memory_space<vmem>>, vector<1x128xf32>,
      %c1_48 = arith.constant 1 : index
      %c0_49 = arith.constant 0 : index
      %79 = vector.load %arg14[%c1_48, %c0_49] : memref<2x128xf32, #tpu.memory_space<vmem>>, vector<1x128xf32>
      %80 = arith.mulf %69, %69 : vector<16x128xf32>
      %cst_50 = arith.constant dense<0.000000e+00> : vector<128xf32>
      %81 = vector.multi_reduction <add>, %80, %cst_50 [0] : vector<16x128xf32> to vector<128xf32>
      %82 = vector.shape_cast %81 : vector<128xf32> to vector<1x128xf32>
      %83 = arith.addf %79, %82 : vector<1x128xf32>
      %c1_51 = arith.constant 1 : index
      %c0_52 = arith.constant 0 : index
      %84 = vector.load %arg14[%c1_51, %c0_52] : memref<2x128xf32, #tpu.memory_space<vmem>>, vector<1x128xf32>
      tpu.vector_store %arg14[%c1_51, %c0_52], %83 {strides = array<i32>} : memref<2x128xf32, #tpu.memory_space<vmem>>, vector<1x128xf32>,
    } else {
    }
    %c2_i32 = arith.constant 2 : i32
    %6 = arith.cmpi eq, %arg0, %c2_i32 : i32
    %7 = arith.extui %6 : i1 to i32
    %c0_i32_2 = arith.constant 0 : i32
    %8 = arith.cmpi ne, %7, %c0_i32_2 : i32
    scf.if %8 {
      %c0 = arith.constant 0 : index
      %c0_3 = arith.constant 0 : index
      %9 = vector.load %arg7[%c0, %c0_3] : memref<1x128xf32, #tpu.memory_space<vmem>>, vector<1x128xf32>
      %c0_4 = arith.constant 0 : index
      %c0_5 = arith.constant 0 : index
      %10 = vector.load %arg8[%c0_4, %c0_5] : memref<1x128xf32, #tpu.memory_space<vmem>>, vector<1x128xf32>
      %c0_6 = arith.constant 0 : index
      %c0_7 = arith.constant 0 : index
      %11 = vector.load %arg14[%c0_6, %c0_7] : memref<2x128xf32, #tpu.memory_space<vmem>>, vector<1x128xf32>
      %c64_i32 = arith.constant 64 : i32
      %12 = tpu.dynamic_rotate %11 by %c64_i32 dim 1 : vector<1x128xf32>, i32 -> vector<1x128xf32>
      %13 = arith.addf %11, %12 : vector<1x128xf32>
      %c32_i32 = arith.constant 32 : i32
      %14 = tpu.dynamic_rotate %13 by %c32_i32 dim 1 : vector<1x128xf32>, i32 -> vector<1x128xf32>
      %15 = arith.addf %13, %14 : vector<1x128xf32>
      %c16_i32 = arith.constant 16 : i32
      %16 = tpu.dynamic_rotate %15 by %c16_i32 dim 1 : vector<1x128xf32>, i32 -> vector<1x128xf32>
      %17 = arith.addf %15, %16 : vector<1x128xf32>
      %c8_i32 = arith.constant 8 : i32
      %18 = tpu.dynamic_rotate %17 by %c8_i32 dim 1 : vector<1x128xf32>, i32 -> vector<1x128xf32>
      %19 = arith.addf %17, %18 : vector<1x128xf32>
      %c1 = arith.constant 1 : index
      %c0_8 = arith.constant 0 : index
      %20 = vector.load %arg14[%c1, %c0_8] : memref<2x128xf32, #tpu.memory_space<vmem>>, vector<1x128xf32>
      %c64_i32_9 = arith.constant 64 : i32
      %21 = tpu.dynamic_rotate %20 by %c64_i32_9 dim 1 : vector<1x128xf32>, i32 -> vector<1x128xf32>
      %22 = arith.addf %20, %21 : vector<1x128xf32>
      %c32_i32_10 = arith.constant 32 : i32
      %23 = tpu.dynamic_rotate %22 by %c32_i32_10 dim 1 : vector<1x128xf32>, i32 -> vector<1x128xf32>
      %24 = arith.addf %22, %23 : vector<1x128xf32>
      %c16_i32_11 = arith.constant 16 : i32
      %25 = tpu.dynamic_rotate %24 by %c16_i32_11 dim 1 : vector<1x128xf32>, i32 -> vector<1x128xf32>
      %26 = arith.addf %24, %25 : vector<1x128xf32>
      %c8_i32_12 = arith.constant 8 : i32
      %27 = tpu.dynamic_rotate %26 by %c8_i32_12 dim 1 : vector<1x128xf32>, i32 -> vector<1x128xf32>
      %28 = arith.addf %26, %27 : vector<1x128xf32>
      %cst = arith.constant 0.001953125 : f32
      %29 = vector.broadcast %cst : f32 to vector<1x128xf32>
      %30 = arith.mulf %19, %29 : vector<1x128xf32>
      %cst_13 = arith.constant 0.001953125 : f32
      %31 = vector.broadcast %cst_13 : f32 to vector<1x128xf32>
      %32 = arith.mulf %28, %31 : vector<1x128xf32>
      %33 = arith.mulf %30, %30 : vector<1x128xf32>
      %34 = arith.subf %32, %33 : vector<1x128xf32>
      %cst_14 = arith.constant 9.99999974E-6 : f32
      %35 = vector.broadcast %cst_14 : f32 to vector<1x128xf32>
      %36 = arith.addf %34, %35 : vector<1x128xf32>
      %37 = math.rsqrt %36 : vector<1x128xf32>
      %38 = arith.mulf %9, %37 : vector<1x128xf32>
      %39 = arith.mulf %38, %30 : vector<1x128xf32>
      %40 = arith.subf %10, %39 : vector<1x128xf32>
      %41 = arith.index_cast %arg1 : i32 to index
      %c0_15 = arith.constant 0 : index
      %c0_16 = arith.constant 0 : index
      %42 = vector.load %arg11[%41, %c0_15, %c0_16] : memref<2x16x128xf32, #tpu.memory_space<vmem>>, vector<1x16x128xf32>
      %43 = vector.shape_cast %42 : vector<1x16x128xf32> to vector<16x128xf32>
      %44 = vector.broadcast %38 : vector<1x128xf32> to vector<16x128xf32>
      %45 = arith.mulf %44, %43 : vector<16x128xf32>
      %46 = vector.broadcast %40 : vector<1x128xf32> to vector<16x128xf32>
      %47 = arith.addf %45, %46 : vector<16x128xf32>
      %cst_17 = arith.constant 0.000000e+00 : f32
      %48 = vector.broadcast %cst_17 : f32 to vector<16x128xf32>
      %49 = arith.maximumf %47, %48 : vector<16x128xf32>
      %c0_18 = arith.constant 0 : index
      %c0_19 = arith.constant 0 : index
      %50 = vector.load %arg9[%c0_18, %c0_19] : memref<16x128xf32, #tpu.memory_space<vmem>>, vector<16x128xf32>
      tpu.vector_store %arg9[%c0_18, %c0_19], %49 {strides = array<i32>} : memref<16x128xf32, #tpu.memory_space<vmem>>, vector<16x128xf32>,
    } else {
    }
    return
  }
  func.func @transform_0(%arg0: i32, %arg1: i32) -> (i32, i32, i32) {
    %c0_i32 = arith.constant 0 : i32
    %c0_i32_0 = arith.constant 0 : i32
    %c0_i32_1 = arith.constant 0 : i32
    return %arg1, %c0_i32, %c0_i32_0 : i32, i32, i32
  }
  func.func @transform_1(%arg0: i32, %arg1: i32) -> (i32, i32, i32) {
    %c0_i32 = arith.constant 0 : i32
    %c0_i32_0 = arith.constant 0 : i32
    %c0_i32_1 = arith.constant 0 : i32
    %c0_i32_2 = arith.constant 0 : i32
    return %c0_i32, %c0_i32_0, %c0_i32_1 : i32, i32, i32
  }
  func.func @transform_2(%arg0: i32, %arg1: i32) -> (i32, i32) {
    %c0_i32 = arith.constant 0 : i32
    %c0_i32_0 = arith.constant 0 : i32
    %c0_i32_1 = arith.constant 0 : i32
    return %c0_i32, %c0_i32_0 : i32, i32
  }
  func.func @transform_3(%arg0: i32, %arg1: i32) -> (i32, i32) {
    %c0_i32 = arith.constant 0 : i32
    %c0_i32_0 = arith.constant 0 : i32
    %c0_i32_1 = arith.constant 0 : i32
    return %c0_i32, %c0_i32_0 : i32, i32
  }
  func.func @transform_4(%arg0: i32, %arg1: i32) -> (i32, i32, i32) {
    %c0_i32 = arith.constant 0 : i32
    %c0_i32_0 = arith.constant 0 : i32
    %c0_i32_1 = arith.constant 0 : i32
    %c0_i32_2 = arith.constant 0 : i32
    return %c0_i32, %c0_i32_0, %c0_i32_1 : i32, i32, i32
  }
  func.func @transform_5(%arg0: i32, %arg1: i32) -> (i32, i32) {
    %c0_i32 = arith.constant 0 : i32
    %c0_i32_0 = arith.constant 0 : i32
    %c0_i32_1 = arith.constant 0 : i32
    return %c0_i32, %c0_i32_0 : i32, i32
  }
  func.func @transform_6(%arg0: i32, %arg1: i32) -> (i32, i32) {
    %c0_i32 = arith.constant 0 : i32
    %c0_i32_0 = arith.constant 0 : i32
    %c0_i32_1 = arith.constant 0 : i32
    return %c0_i32, %c0_i32_0 : i32, i32
  }
  func.func @transform_7(%arg0: i32, %arg1: i32) -> (i32, i32) {
    %c0_i32 = arith.constant 0 : i32
    %c0_i32_0 = arith.constant 0 : i32
    return %arg1, %c0_i32 : i32, i32
  }
}

</mosaic_0001>

<llo_original>
// kernel: tpu_custom_call.1
$region0: #{tpu_custom_call.1}
  #allocation0 [shape = 'u32[]', space=smem, size = 0x4, offset = 0x4, fixed_abs, tag = 'smem constant byte address 0x4 - core index']
  #allocation1 [shape = 'u32[144,128]{1,0:T(1,128)}', space=vmem, size = 0x12000, scoped, tag = 'internal scratch']
  #allocation2 [shape = 'f32[2,16,128]{2,1,0:T(8,128)}', space=vmem, size = 0x4000, scoped, tag = 'scratch operand']
  #allocation3 [shape = 'f32[2,16,128]{2,1,0:T(8,128)}', space=vmem, size = 0x4000, scoped, tag = 'scratch operand']
  #allocation4 [shape = 'f32[18,128]{1,0:T(8,128)}', space=vmem, size = 0x3000, scoped, tag = 'scratch operand']
  #allocation5 [shape = 'f32[2,128]{1,0:T(2,128)}', space=vmem, size = 0x400, scoped, tag = 'scratch operand']
  #allocation6 [shape = 'f32[2,128]{1,0:T(2,128)}', space=vmem, size = 0x400, scoped, tag = 'scratch operand']
  %s0 = inlined_call_operand.vmem [shape: f32[2,18,64], index: 0, kind: input, shape index: {}]
  %s1 = inlined_call_operand.hbm [shape: bf16[3,64,128], index: 1, kind: input, shape index: {}]
  %s2 = inlined_call_operand.vmem [shape: f32[1,128], index: 2, kind: input, shape index: {}]
  %s3 = inlined_call_operand.vmem [shape: f32[1,128], index: 3, kind: input, shape index: {}]
  %s4 = inlined_call_operand.hbm [shape: bf16[3,128,128], index: 4, kind: input, shape index: {}]
  %s5 = inlined_call_operand.vmem [shape: f32[1,128], index: 5, kind: input, shape index: {}]
  %s6 = inlined_call_operand.vmem [shape: f32[1,128], index: 6, kind: input, shape index: {}]
  %s7 = inlined_call_operand.hbm [shape: f32[32,128], index: 7, kind: output, shape index: {}]
  %s8 = sld [smem:[#allocation0]]
  $region85: #{tpu_custom_call.1} parent=0
    _
  %s10 = ssub.s32 1, %s8
  %s11 = scalar_select 0, %s10, %s8
  $region1: #{tpu_custom_call.1} parent=0
    #allocation7 [shape = 'u8[49152]{0}', space=vmem, size = 0xc000, scoped, tag = 'input window, operand 1, single buffered']
    #allocation8 [shape = 's32[2]{0}', space=sflag, size = 0x8, scoped, tag = 'scoped memory for tpu_custom_call.1']
    #allocation9 [shape = 's32[2]{0}', space=sflag, size = 0x8, scoped, tag = 'scoped memory for tpu_custom_call.1']
    #allocation10 [shape = 'u8[98304]{0}', space=vmem, size = 0x18000, scoped, tag = 'input window, operand 4, single buffered']
    #allocation11 [shape = 's32[1]{0}', space=sflag, size = 0x4, scoped, tag = 'scoped memory for tpu_custom_call.1']
    #allocation12 [shape = 'u8[16384]{0}', space=vmem, size = 0x4000, scoped, tag = 'output window, operand 0']
    %12 = vsyncpa [#allocation8], 0
    %13 = vsyncpa [#allocation11], 0
    %14 = vsyncpa [#allocation9], 0
    %s15 = scalar_lea.sflag [#allocation9], 1
    %16 = vsyncpa %s15, 0
    loop: start=0, step=1, limit=8
    $region2: #{tpu_custom_call.1} parent=1 // loop_pre_header
      _
    $region3: #{tpu_custom_call.1} parent=1 // loop_header
      %s18 = sphi 0, %s22
      %p19 = scmp.ge.s32.totalorder %s18, 8
      %s25 = sphi 0, %s37
      %s26 = sphi 0, %s33
      %s27 = sphi 0, %s25
      %s28 = sphi 0, %s26
      %s29 = sphi 0, %s27
      %s30 = sphi 0, %s28
      %s40 = sphi 0, %s42
      %s43 = sphi 0, %s40
      %s44 = sphi 0, %s43
      %s60 = sphi 0, %s44
      %s64 = sphi 0, %s64
      %s66 = sphi 0, %s64
      %s67 = sphi 0, %s66
      %s81 = sphi 0, %s67
      %s85 = sphi 0, %s85
      %s87 = sphi 0, %s85
      %s88 = sphi 0, %s87
      %s102 = sphi 0, %s88
      %s106 = sphi 0, %s106
      %s108 = sphi 0, %s106
      %s109 = sphi 0, %s108
      %s123 = sphi 0, %s109
      %s127 = sphi 0, %s127
      %s129 = sphi 0, %s127
      %s130 = sphi 0, %s129
      %s144 = sphi 0, %s130
      %s148 = sphi 0, %s148
      %s150 = sphi 0, %s148
      %s151 = sphi 0, %s150
      %s165 = sphi 0, %s151
      %s169 = sphi 0, %s169
      %s171 = sphi 0, %s169
      %s172 = sphi 0, %s171
      %s186 = sphi 0, %s172
      %s192 = sphi 0, %s194
      %s195 = sphi 0, %s192
      %s196 = sphi 0, %s195
      %s212 = sphi 0, %s196
    $region4: #{tpu_custom_call.1} parent=1 // loop_header_branch
      %21 = sbr.rel (%p19) target = $region8
    $region5: #{tpu_custom_call.1} parent=1 // loop_body
      %s23 = ssub.s32 %s18, 1
      %s24 = ssub.s32 %s18, 2
      %s31 = sadd.s32 1, %s26
      %p32 = scmp.ge.s32.totalorder %s31, 2
      %s33 = scalar_select %p32, 0, %s31
      %s34 = sadd.s32 1, %s25
      %s35 = scalar_select %p32, %s34, %s25
      %p36 = scmp.ge.s32.totalorder %s35, 3
      %s37 = scalar_select %p36, 0, %s35
      %s38 = ssub.s32 %s26, %s33
      %p39 = scmp.eq.s32.totalorder %s38, 0
      %s41 = sadd.s32 %s40, 1
      %s42 = scalar_select %p39, %s40, %s41
      %p45 = pneg %p39
      %p46 = scmp.eq.s32.totalorder %s18, 5
      %p47 = por %p45, %p46
      %p48 = scmp.ne.s32.totalorder %s40, %s43
      %p49 = scmp.eq.s32.totalorder %s18, 0
      %p50 = por %p48, %p49
      %p51 = scmp.ne.s32.totalorder %s40, %s43
      %p52 = scmp.eq.s32.totalorder %s23, 5
      %p53 = por %p51, %p52
      %p54 = scmp.ne.s32.totalorder %s43, %s44
      %p55 = scmp.eq.s32.totalorder %s23, 0
      %p56 = por %p54, %p55
      %p57 = scmp.ne.s32.totalorder %s43, %s44
      %p58 = scmp.eq.s32.totalorder %s24, 5
      %p59 = por %p57, %p58
      %p61 = scmp.ne.s32.totalorder %s44, %s60
      %p62 = scmp.eq.s32.totalorder %s24, 0
      %p63 = por %p61, %p62
      %s65 = sadd.s32 %s64, 1
      %p68 = scmp.eq.s32.totalorder %s18, 5
      %p69 = scmp.ne.s32.totalorder %s64, %s66
      %p70 = scmp.eq.s32.totalorder %s18, 0
      %p71 = por %p69, %p70
      %p72 = scmp.ne.s32.totalorder %s64, %s66
      %p73 = scmp.eq.s32.totalorder %s23, 5
      %p74 = por %p72, %p73
      %p75 = scmp.ne.s32.totalorder %s66, %s67
      %p76 = scmp.eq.s32.totalorder %s23, 0
      %p77 = por %p75, %p76
      %p78 = scmp.ne.s32.totalorder %s66, %s67
      %p79 = scmp.eq.s32.totalorder %s24, 5
      %p80 = por %p78, %p79
      %p82 = scmp.ne.s32.totalorder %s67, %s81
      %p83 = scmp.eq.s32.totalorder %s24, 0
      %p84 = por %p82, %p83
      %s86 = sadd.s32 %s85, 1
      %p89 = scmp.eq.s32.totalorder %s18, 5
      %p90 = scmp.ne.s32.totalorder %s85, %s87
      %p91 = scmp.eq.s32.totalorder %s18, 0
      %p92 = por %p90, %p91
      %p93 = scmp.ne.s32.totalorder %s85, %s87
      %p94 = scmp.eq.s32.totalorder %s23, 5
      %p95 = por %p93, %p94
      %p96 = scmp.ne.s32.totalorder %s87, %s88
      %p97 = scmp.eq.s32.totalorder %s23, 0
      %p98 = por %p96, %p97
      %p99 = scmp.ne.s32.totalorder %s87, %s88
      %p100 = scmp.eq.s32.totalorder %s24, 5
      %p101 = por %p99, %p100
      %p103 = scmp.ne.s32.totalorder %s88, %s102
      %p104 = scmp.eq.s32.totalorder %s24, 0
      %p105 = por %p103, %p104
      %s107 = sadd.s32 %s106, 1
      %p110 = scmp.eq.s32.totalorder %s18, 5
      %p111 = scmp.ne.s32.totalorder %s106, %s108
      %p112 = scmp.eq.s32.totalorder %s18, 0
      %p113 = por %p111, %p112
      %p114 = scmp.ne.s32.totalorder %s106, %s108
      %p115 = scmp.eq.s32.totalorder %s23, 5
      %p116 = por %p114, %p115
      %p117 = scmp.ne.s32.totalorder %s108, %s109
      %p118 = scmp.eq.s32.totalorder %s23, 0
      %p119 = por %p117, %p118
      %p120 = scmp.ne.s32.totalorder %s108, %s109
      %p121 = scmp.eq.s32.totalorder %s24, 5
      %p122 = por %p120, %p121
      %p124 = scmp.ne.s32.totalorder %s109, %s123
      %p125 = scmp.eq.s32.totalorder %s24, 0
      %p126 = por %p124, %p125
      %s128 = sadd.s32 %s127, 1
      %p131 = scmp.eq.s32.totalorder %s18, 5
      %p132 = scmp.ne.s32.totalorder %s127, %s129
      %p133 = scmp.eq.s32.totalorder %s18, 0
      %p134 = por %p132, %p133
      %p135 = scmp.ne.s32.totalorder %s127, %s129
      %p136 = scmp.eq.s32.totalorder %s23, 5
      %p137 = por %p135, %p136
      %p138 = scmp.ne.s32.totalorder %s129, %s130
      %p139 = scmp.eq.s32.totalorder %s23, 0
      %p140 = por %p138, %p139
      %p141 = scmp.ne.s32.totalorder %s129, %s130
      %p142 = scmp.eq.s32.totalorder %s24, 5
      %p143 = por %p141, %p142
      %p145 = scmp.ne.s32.totalorder %s130, %s144
      %p146 = scmp.eq.s32.totalorder %s24, 0
      %p147 = por %p145, %p146
      %s149 = sadd.s32 %s148, 1
      %p152 = scmp.eq.s32.totalorder %s18, 5
      %p153 = scmp.ne.s32.totalorder %s148, %s150
      %p154 = scmp.eq.s32.totalorder %s18, 0
      %p155 = por %p153, %p154
      %p156 = scmp.ne.s32.totalorder %s148, %s150
      %p157 = scmp.eq.s32.totalorder %s23, 5
      %p158 = por %p156, %p157
      %p159 = scmp.ne.s32.totalorder %s150, %s151
      %p160 = scmp.eq.s32.totalorder %s23, 0
      %p161 = por %p159, %p160
      %p162 = scmp.ne.s32.totalorder %s150, %s151
      %p163 = scmp.eq.s32.totalorder %s24, 5
      %p164 = por %p162, %p163
      %p166 = scmp.ne.s32.totalorder %s151, %s165
      %p167 = scmp.eq.s32.totalorder %s24, 0
      %p168 = por %p166, %p167
      %s170 = sadd.s32 %s169, 1
      %p173 = scmp.eq.s32.totalorder %s18, 5
      %p174 = scmp.ne.s32.totalorder %s169, %s171
      %p175 = scmp.eq.s32.totalorder %s18, 0
      %p176 = por %p174, %p175
      %p177 = scmp.ne.s32.totalorder %s169, %s171
      %p178 = scmp.eq.s32.totalorder %s23, 5
      %p179 = por %p177, %p178
      %p180 = scmp.ne.s32.totalorder %s171, %s172
      %p181 = scmp.eq.s32.totalorder %s23, 0
      %p182 = por %p180, %p181
      %p183 = scmp.ne.s32.totalorder %s171, %s172
      %p184 = scmp.eq.s32.totalorder %s24, 5
      %p185 = por %p183, %p184
      %p187 = scmp.ne.s32.totalorder %s172, %s186
      %p188 = scmp.eq.s32.totalorder %s24, 0
      %p189 = por %p187, %p188
      %s190 = ssub.s32 %s26, %s33
      %p191 = scmp.eq.s32.totalorder %s190, 0
      %s193 = sadd.s32 %s192, 1
      %s194 = scalar_select %p191, %s192, %s193
      %p197 = pneg %p191
      %p198 = scmp.eq.s32.totalorder %s18, 5
      %p199 = por %p197, %p198
      %p200 = scmp.ne.s32.totalorder %s192, %s195
      %p201 = scmp.eq.s32.totalorder %s18, 0
      %p202 = por %p200, %p201
      %p203 = scmp.ne.s32.totalorder %s192, %s195
      %p204 = scmp.eq.s32.totalorder %s23, 5
      %p205 = por %p203, %p204
      %p206 = scmp.ne.s32.totalorder %s195, %s196
      %p207 = scmp.eq.s32.totalorder %s23, 0
      %p208 = por %p206, %p207
      %p209 = scmp.ne.s32.totalorder %s195, %s196
      %p210 = scmp.eq.s32.totalorder %s24, 5
      %p211 = por %p209, %p210
      %p213 = scmp.ne.s32.totalorder %s196, %s212
      %p214 = scmp.eq.s32.totalorder %s24, 0
      %p215 = por %p213, %p214
      %p216 = scmp.le.s32.totalorder 1, %s18
      %p217 = scmp.lt.s32.totalorder %s18, 7
      %p218 = pnand %p216, %p217
      %p219 = pneg %p218
      // Predicated region
      $region9: #{tpu_custom_call.1} parent=5 // pred_check
        _
      $region10: #{tpu_custom_call.1} parent=5 // pred_check_branch
        %221 = sbr.rel (%p218) target = $region12
      $region11: #{tpu_custom_call.1} parent=5 // pred_region
        %s222 = ssub.s32 %s18, 1
        // Predicated region
        $region13: #{tpu_custom_call.1} parent=11 // pred_check
          %p223 = pneg %p77
        $region14: #{tpu_custom_call.1} parent=11 // pred_check_branch
          %225 = sbr.rel (%p223) target = $region16
        $region15: #{tpu_custom_call.1} parent=11 // pred_region
          %s227 = ssub.s32 1536, 1536
          %228 = vsyncadd [#allocation8], %s227
          %s229 = sshll.u32 [#allocation7], 4
          %s230 = int_to_ptr.vmem [resolvable:$true] %s229
          %235 = dma.hbm_to_vmem [thread:$0]  %s1, 1536, %s230, [#allocation8], 64, 64, 4
        $region16: #{tpu_custom_call.1} parent=11 // pred_fallthru
          _
        // Predicated region
        $region17: #{tpu_custom_call.1} parent=11 // pred_check
          %p236 = pneg %p98
        $region18: #{tpu_custom_call.1} parent=11 // pred_check_branch
          %238 = sbr.rel (%p236) target = $region20
        $region19: #{tpu_custom_call.1} parent=11 // pred_region
          _
        $region20: #{tpu_custom_call.1} parent=11 // pred_fallthru
          _
        // Predicated region
        $region21: #{tpu_custom_call.1} parent=11 // pred_check
          %p239 = pneg %p119
        $region22: #{tpu_custom_call.1} parent=11 // pred_check_branch
          %241 = sbr.rel (%p239) target = $region24
        $region23: #{tpu_custom_call.1} parent=11 // pred_region
          _
        $region24: #{tpu_custom_call.1} parent=11 // pred_fallthru
          _
        // Predicated region
        $region25: #{tpu_custom_call.1} parent=11 // pred_check
          %p242 = pneg %p140
        $region26: #{tpu_custom_call.1} parent=11 // pred_check_branch
          %244 = sbr.rel (%p242) target = $region28
        $region27: #{tpu_custom_call.1} parent=11 // pred_region
          %s246 = ssub.s32 3072, 3072
          %247 = vsyncadd [#allocation11], %s246
          %s248 = sshll.u32 [#allocation10], 4
          %s249 = int_to_ptr.vmem [resolvable:$true] %s248
          %254 = dma.hbm_to_vmem [thread:$0]  %s4, 3072, %s249, [#allocation11], 64, 64, 4
        $region28: #{tpu_custom_call.1} parent=11 // pred_fallthru
          _
        // Predicated region
        $region29: #{tpu_custom_call.1} parent=11 // pred_check
          %p255 = pneg %p161
        $region30: #{tpu_custom_call.1} parent=11 // pred_check_branch
          %257 = sbr.rel (%p255) target = $region32
        $region31: #{tpu_custom_call.1} parent=11 // pred_region
          _
        $region32: #{tpu_custom_call.1} parent=11 // pred_fallthru
          _
        // Predicated region
        $region33: #{tpu_custom_call.1} parent=11 // pred_check
          %p258 = pneg %p182
        $region34: #{tpu_custom_call.1} parent=11 // pred_check_branch
          %260 = sbr.rel (%p258) target = $region36
        $region35: #{tpu_custom_call.1} parent=11 // pred_region
          _
        $region36: #{tpu_custom_call.1} parent=11 // pred_fallthru
          _
      $region12: #{tpu_custom_call.1} parent=5 // pred_fallthru
        _
      %p261 = scmp.lt.s32.totalorder %s18, 6
      // Predicated region
      $region37: #{tpu_custom_call.1} parent=5 // pred_check
        %p262 = pneg %p261
      $region38: #{tpu_custom_call.1} parent=5 // pred_check_branch
        %264 = sbr.rel (%p262) target = $region40
      $region39: #{tpu_custom_call.1} parent=5 // pred_region
        // Predicated region
        $region41: #{tpu_custom_call.1} parent=39 // pred_check
          %p265 = pneg %p50
        $region42: #{tpu_custom_call.1} parent=39 // pred_check_branch
          %267 = sbr.rel (%p265) target = $region44
        $region43: #{tpu_custom_call.1} parent=39 // pred_region
          %p268 = scmp.lt.s32.totalorder %s26, 1
          %s269 = scalar_select %p268, %s26, 1
          %s270 = smul.addr %s269, 3
          %s271 = smul.addr %s270, 8
          %s272 = scalar_lea.vmem %s0, %s271
        $region44: #{tpu_custom_call.1} parent=39 // pred_fallthru
          _
      $region40: #{tpu_custom_call.1} parent=5 // pred_fallthru
        _
      %p273 = scmp.le.s32.totalorder 1, %s18
      %p274 = scmp.lt.s32.totalorder %s18, 7
      %p275 = pnand %p273, %p274
      %p276 = pneg %p275
      // Predicated region
      $region45: #{tpu_custom_call.1} parent=5 // pred_check
        _
      $region46: #{tpu_custom_call.1} parent=5 // pred_check_branch
        %278 = sbr.rel (%p275) target = $region48
      $region47: #{tpu_custom_call.1} parent=5 // pred_region
        %s279 = ssub.s32 %s18, 1
        // Predicated region
        $region49: #{tpu_custom_call.1} parent=47 // pred_check
          %p280 = pneg %p77
        $region50: #{tpu_custom_call.1} parent=47 // pred_check_branch
          %282 = sbr.rel (%p280) target = $region52
        $region51: #{tpu_custom_call.1} parent=47 // pred_region
          %283 = dma.done [#allocation8], 1536
        $region52: #{tpu_custom_call.1} parent=47 // pred_fallthru
          _
        // Predicated region
        $region53: #{tpu_custom_call.1} parent=47 // pred_check
          %p284 = pneg %p140
        $region54: #{tpu_custom_call.1} parent=47 // pred_check_branch
          %286 = sbr.rel (%p284) target = $region56
        $region55: #{tpu_custom_call.1} parent=47 // pred_region
          %287 = dma.done [#allocation11], 3072
        $region56: #{tpu_custom_call.1} parent=47 // pred_fallthru
          _
        %p288 = scmp.lt.s32.totalorder %s28, 1
        %s289 = scalar_select %p288, %s28, 1
        %s290 = smul.addr %s289, 3
        %s291 = smul.addr %s290, 8
        %s292 = scalar_lea.vmem %s0, %s291
        %p293 = pneg %p56
        %p294 = pneg %p53
        %p295 = pneg %p77
        %p296 = pneg %p74
        %p297 = pneg %p98
        %p298 = pneg %p95
        %p299 = pneg %p119
        %p300 = pneg %p116
        %p301 = pneg %p140
        %p302 = pneg %p137
        %p303 = pneg %p161
        %p304 = pneg %p158
        %p305 = pneg %p182
        %p306 = pneg %p179
        %p307 = pneg %p208
        %p308 = pneg %p205
        %s309 = sand.u32 %s195, 1
        %s310 = scalar_lea.sflag [#allocation9], %s309
        %s311 = sand.u32 %s195, 1
        %s312 = smul.addr %s311, 16
        %s313 = scalar_lea.vmem [#allocation12], %s312
        %p314 = scmp.lt.s32.totalorder %s28, 1
        %s315 = scalar_select %p314, %s28, 1
        %s316 = smul.addr %s315, 3
        %s317 = smul.addr %s316, 8
        %s318 = scalar_lea.vmem %s0, %s317
        %s319 = smul.u32 2, %s28
        %p321 = scmp.eq.s32.totalorder %s27, 0
        // Predicated region
        $region57: #{tpu_custom_call.1} parent=47 // pred_check
          %p322 = pneg %p321
        $region58: #{tpu_custom_call.1} parent=47 // pred_check_branch
          %324 = sbr.rel (%p322) target = $region60
        $region59: #{tpu_custom_call.1} parent=47 // pred_region
          %p325 = scmp.eq.s32.totalorder %s28, 0
          // Predicated region
          $region61: #{tpu_custom_call.1} parent=59 // pred_check
            %p326 = pneg %p325
          $region62: #{tpu_custom_call.1} parent=59 // pred_check_branch
            %328 = sbr.rel (%p326) target = $region64
          $region63: #{tpu_custom_call.1} parent=59 // pred_region
            %329 = vst [vmem:[#allocation5] sm:$0x3] 0.0
            %330 = vst [vmem:[#allocation6] sm:$0x3] 0.0
          $region64: #{tpu_custom_call.1} parent=59 // pred_fallthru
            _
          %v331 = vld [vmem:[%s318] sm:$0xff]
          %v332 = vld [vmem:[%s318 + $0x8] sm:$0xff]
          %v333 = vpack.c.bf16 %v332, %v331
          %v334 = vld [vmem:[#allocation7] sm:$0xf]
          %v335 = vld [vmem:[#allocation7 + $0x4] sm:$0xf]
          %v336 = vld [vmem:[#allocation7 + $0x8] sm:$0xf]
          %v337 = vld [vmem:[#allocation7 + $0xc] sm:$0xf]
          %v338 = vld [vmem:[#allocation7 + $0x10] sm:$0xf]
          %v339 = vld [vmem:[#allocation7 + $0x14] sm:$0xf]
          %v340 = vld [vmem:[#allocation7 + $0x18] sm:$0xf]
          %v341 = vld [vmem:[#allocation7 + $0x1c] sm:$0xf]
          %v342 = vld [vmem:[%s318 + $0x1] sm:$0xff]
          %v343 = vld [vmem:[%s318 + $0x9] sm:$0xff]
          %v344 = vpack.c.bf16 %v343, %v342
          %s345 = scalar_lea.vmem [#allocation7], 32
          %v346 = vld [vmem:[%s345] sm:$0xf]
          %v347 = vld [vmem:[%s345 + $0x4] sm:$0xf]
          %v348 = vld [vmem:[%s345 + $0x8] sm:$0xf]
          %v349 = vld [vmem:[%s345 + $0xc] sm:$0xf]
          %v350 = vld [vmem:[%s345 + $0x10] sm:$0xf]
          %v351 = vld [vmem:[%s345 + $0x14] sm:$0xf]
          %v352 = vld [vmem:[%s345 + $0x18] sm:$0xf]
          %v353 = vld [vmem:[%s345 + $0x1c] sm:$0xf]
          %v362 = vunpack.c.l.b16 %v346
          %v363 = vunpack.c.l.b16 %v347
          %v364 = vunpack.c.l.b16 %v348
          %v365 = vunpack.c.l.b16 %v349
          %v366 = vunpack.c.l.b16 %v350
          %v367 = vunpack.c.l.b16 %v351
          %v368 = vunpack.c.l.b16 %v352
          %v369 = vunpack.c.l.b16 %v353
          %v370 = vpack.c.b16 %v363, %v362
          %v371 = vpack.c.b16 %v365, %v364
          %v372 = vpack.c.b16 %v367, %v366
          %v373 = vpack.c.b16 %v369, %v368
          %vm378 = vcmask 523264
          %v380 = vsel %vm378, %v344, 0
          %382 = vmatprep.subr.bf16.mxu0 0
          %383 = vmatpush1.bf16.msra.mxu0 %v370
          %384 = vmatprep.subr.bf16.mxu0 0
          %385 = vmatpush1.bf16.msra.mxu0 %v371
          %386 = vmatprep.subr.bf16.mxu0 0
          %387 = vmatpush1.bf16.msra.mxu0 %v372
          %388 = vmatprep.subr.bf16.mxu0 0
          %389 = vmatpush1.bf16.msra.mxu0 %v373
          %390 = vmatprep.subr.bf16.mxu0 0
          %391 = vmatpush1.bf16.msra.mxu0 0
          %392 = vmatprep.subr.bf16.mxu0 0
          %393 = vmatpush1.bf16.msra.mxu0 0
          %394 = vmatprep.subr.bf16.mxu0 0
          %395 = vmatpush1.bf16.msra.mxu0 0
          %396 = vmatprep.subr.bf16.mxu0 0
          %397 = vmatpush1.bf16.msra.mxu0 0
          %398 = vmatprep.subr.bf16.mxu0 0
          %399 = vmatpush1.bf16.msra.mxu0 0
          %400 = vmatprep.subr.bf16.mxu0 0
          %401 = vmatpush1.bf16.msra.mxu0 0
          %402 = vmatprep.subr.bf16.mxu0 0
          %403 = vmatpush1.bf16.msra.mxu0 0
          %404 = vmatprep.subr.bf16.mxu0 0
          %405 = vmatpush1.bf16.msra.mxu0 0
          %406 = vmatprep.subr.bf16.mxu0 0
          %407 = vmatpush1.bf16.msra.mxu0 0
          %408 = vmatprep.subr.bf16.mxu0 0
          %409 = vmatpush1.bf16.msra.mxu0 0
          %410 = vmatprep.subr.bf16.mxu0 0
          %411 = vmatpush1.bf16.msra.mxu0 0
          %412 = vmatprep.subr.bf16.mxu0 0
          %413 = vmatpush1.bf16.msra.mxu0 0
          %414 = vmatprep.mubr.bf16.mxu0 0
          %415 = vmatmul.mubr.bf16.gmra.mrb[0].mxu0 %v380
          %v416 = vpop.f32.mrb[0].mxu0
          %v417 = vadd.f32 0.0, %v416
          %v418 = vpop.f32.mrb[0].mxu0
          %v419 = vpop.f32.mrb[0].mxu0
          %v420 = vadd.f32 0.0, %v419
          %v421 = vpop.f32.mrb[0].mxu0
          %422 = vdwg.mxu0
          %v431 = vunpack.c.l.b16 %v334
          %v432 = vunpack.c.l.b16 %v335
          %v433 = vunpack.c.l.b16 %v336
          %v434 = vunpack.c.l.b16 %v337
          %v435 = vunpack.c.l.b16 %v338
          %v436 = vunpack.c.l.b16 %v339
          %v437 = vunpack.c.l.b16 %v340
          %v438 = vunpack.c.l.b16 %v341
          %v439 = vpack.c.b16 %v432, %v431
          %v440 = vpack.c.b16 %v434, %v433
          %v441 = vpack.c.b16 %v436, %v435
          %v442 = vpack.c.b16 %v438, %v437
          %v448 = vsel %vm378, %v333, 0
          %450 = vmatprep.subr.bf16.mxu0 0
          %451 = vmatpush1.bf16.msra.mxu0 %v439
          %452 = vmatprep.subr.bf16.mxu0 0
          %453 = vmatpush1.bf16.msra.mxu0 %v440
          %454 = vmatprep.subr.bf16.mxu0 0
          %455 = vmatpush1.bf16.msra.mxu0 %v441
          %456 = vmatprep.subr.bf16.mxu0 0
          %457 = vmatpush1.bf16.msra.mxu0 %v442
          %458 = vmatprep.subr.bf16.mxu0 0
          %459 = vmatpush1.bf16.msra.mxu0 0
          %460 = vmatprep.subr.bf16.mxu0 0
          %461 = vmatpush1.bf16.msra.mxu0 0
          %462 = vmatprep.subr.bf16.mxu0 0
          %463 = vmatpush1.bf16.msra.mxu0 0
          %464 = vmatprep.subr.bf16.mxu0 0
          %465 = vmatpush1.bf16.msra.mxu0 0
          %466 = vmatprep.subr.bf16.mxu0 0
          %467 = vmatpush1.bf16.msra.mxu0 0
          %468 = vmatprep.subr.bf16.mxu0 0
          %469 = vmatpush1.bf16.msra.mxu0 0
          %470 = vmatprep.subr.bf16.mxu0 0
          %471 = vmatpush1.bf16.msra.mxu0 0
          %472 = vmatprep.subr.bf16.mxu0 0
          %473 = vmatpush1.bf16.msra.mxu0 0
          %474 = vmatprep.subr.bf16.mxu0 0
          %475 = vmatpush1.bf16.msra.mxu0 0
          %476 = vmatprep.subr.bf16.mxu0 0
          %477 = vmatpush1.bf16.msra.mxu0 0
          %478 = vmatprep.subr.bf16.mxu0 0
          %479 = vmatpush1.bf16.msra.mxu0 0
          %480 = vmatprep.subr.bf16.mxu0 0
          %481 = vmatpush1.bf16.msra.mxu0 0
          %482 = vmatprep.mubr.bf16.mxu0 0
          %483 = vmatmul.mubr.bf16.gmra.mrb[0].mxu0 %v448
          %v484 = vpop.f32.mrb[0].mxu0
          %v485 = vadd.f32 %v417, %v484
          %v486 = vpop.f32.mrb[0].mxu0
          %v487 = vpop.f32.mrb[0].mxu0
          %v488 = vadd.f32 %v420, %v487
          %v489 = vpop.f32.mrb[0].mxu0
          %490 = vdwg.mxu0
          %v491 = vld [vmem:[%s318 + $0x2] sm:$0xff]
          %v492 = vld [vmem:[%s318 + $0xa] sm:$0xff]
          %v493 = vpack.c.bf16 %v492, %v491
          %s494 = scalar_lea.vmem [#allocation7], 64
          %v495 = vld [vmem:[%s494] sm:$0xf]
          %v496 = vld [vmem:[%s494 + $0x4] sm:$0xf]
          %v497 = vld [vmem:[%s494 + $0x8] sm:$0xf]
          %v498 = vld [vmem:[%s494 + $0xc] sm:$0xf]
          %v499 = vld [vmem:[%s494 + $0x10] sm:$0xf]
          %v500 = vld [vmem:[%s494 + $0x14] sm:$0xf]
          %v501 = vld [vmem:[%s494 + $0x18] sm:$0xf]
          %v502 = vld [vmem:[%s494 + $0x1c] sm:$0xf]
          %v511 = vunpack.c.l.b16 %v495
          %v512 = vunpack.c.l.b16 %v496
          %v513 = vunpack.c.l.b16 %v497
          %v514 = vunpack.c.l.b16 %v498
          %v515 = vunpack.c.l.b16 %v499
          %v516 = vunpack.c.l.b16 %v500
          %v517 = vunpack.c.l.b16 %v501
          %v518 = vunpack.c.l.b16 %v502
          %v519 = vpack.c.b16 %v512, %v511
          %v520 = vpack.c.b16 %v514, %v513
          %v521 = vpack.c.b16 %v516, %v515
          %v522 = vpack.c.b16 %v518, %v517
          %v528 = vsel %vm378, %v493, 0
          %530 = vmatprep.subr.bf16.mxu0 0
          %531 = vmatpush1.bf16.msra.mxu0 %v519
          %532 = vmatprep.subr.bf16.mxu0 0
          %533 = vmatpush1.bf16.msra.mxu0 %v520
          %534 = vmatprep.subr.bf16.mxu0 0
          %535 = vmatpush1.bf16.msra.mxu0 %v521
          %536 = vmatprep.subr.bf16.mxu0 0
          %537 = vmatpush1.bf16.msra.mxu0 %v522
          %538 = vmatprep.subr.bf16.mxu0 0
          %539 = vmatpush1.bf16.msra.mxu0 0
          %540 = vmatprep.subr.bf16.mxu0 0
          %541 = vmatpush1.bf16.msra.mxu0 0
          %542 = vmatprep.subr.bf16.mxu0 0
          %543 = vmatpush1.bf16.msra.mxu0 0
          %544 = vmatprep.subr.bf16.mxu0 0
          %545 = vmatpush1.bf16.msra.mxu0 0
          %546 = vmatprep.subr.bf16.mxu0 0
          %547 = vmatpush1.bf16.msra.mxu0 0
          %548 = vmatprep.subr.bf16.mxu0 0
          %549 = vmatpush1.bf16.msra.mxu0 0
          %550 = vmatprep.subr.bf16.mxu0 0
          %551 = vmatpush1.bf16.msra.mxu0 0
          %552 = vmatprep.subr.bf16.mxu0 0
          %553 = vmatpush1.bf16.msra.mxu0 0
          %554 = vmatprep.subr.bf16.mxu0 0
          %555 = vmatpush1.bf16.msra.mxu0 0
          %556 = vmatprep.subr.bf16.mxu0 0
          %557 = vmatpush1.bf16.msra.mxu0 0
          %558 = vmatprep.subr.bf16.mxu0 0
          %559 = vmatpush1.bf16.msra.mxu0 0
          %560 = vmatprep.subr.bf16.mxu0 0
          %561 = vmatpush1.bf16.msra.mxu0 0
          %562 = vmatprep.mubr.bf16.mxu0 0
          %563 = vmatmul.mubr.bf16.gmra.mrb[0].mxu0 %v528
          %v564 = vpop.f32.mrb[0].mxu0
          %v565 = vadd.f32 0.0, %v564
          %v566 = vpop.f32.mrb[0].mxu0
          %v567 = vpop.f32.mrb[0].mxu0
          %v568 = vadd.f32 0.0, %v567
          %v569 = vpop.f32.mrb[0].mxu0
          %570 = vdwg.mxu0
          %v571 = vadd.f32 %v485, %v565
          %v572 = vadd.f32 %v488, %v568
          %s573 = smul.u32 %s28, 16
          %s574 = scalar_lea.vmem [#allocation2], %s573
          %575 = vst [vmem:[%s574] sm:$0xff] %v571
          %576 = vst [vmem:[%s574 + $0x8] sm:$0xff] %v572
          %v577 = vld [vmem:[#allocation5] sm:$0x1]
          %v578 = vadd.f32 %v571, %v572
          %v579 = vrot.slane %v578, 4
          %v580 = vadd.f32 %v578, %v579
          %v581 = vrot.slane %v580, 2
          %v582 = vadd.f32 %v580, %v581
          %v583 = vrot.slane %v582, 1
          %v584 = vadd.f32 %v582, %v583
          %v585 = vadd.f32 %v577, %v584
          %586 = vst [vmem:[#allocation5] sm:$0x1] %v585
          %v587 = vld [vmem:[#allocation5 + $0x1] sm:$0x1]
          %v588 = vmul.f32 %v571, %v571
          %v589 = vmul.f32 %v572, %v572
          %v590 = vadd.f32 %v588, %v589
          %v591 = vrot.slane %v590, 4
          %v592 = vadd.f32 %v590, %v591
          %v593 = vrot.slane %v592, 2
          %v594 = vadd.f32 %v592, %v593
          %v595 = vrot.slane %v594, 1
          %v596 = vadd.f32 %v594, %v595
          %v597 = vadd.f32 %v587, %v596
          %598 = vst [vmem:[#allocation5 + $0x1] sm:$0x1] %v597
        $region60: #{tpu_custom_call.1} parent=47 // pred_fallthru
          _
        %p599 = scmp.eq.s32.totalorder %s27, 1
        // Predicated region
        $region65: #{tpu_custom_call.1} parent=47 // pred_check
          %p600 = pneg %p599
        $region66: #{tpu_custom_call.1} parent=47 // pred_check_branch
          %602 = sbr.rel (%p600) target = $region68
        $region67: #{tpu_custom_call.1} parent=47 // pred_region
          %v603 = vld [vmem:[%s2] sm:$0x1]
          %v604 = vld [vmem:[%s3] sm:$0x1]
          %v605 = vld [vmem:[#allocation5] sm:$0x1]
          %606 = vrot.lane.b32.xlu0 %v605, 64
          %v607 = vpop.permute.xlu0 %606
          %v608 = vadd.f32 %v605, %v607
          %609 = vrot.lane.b32.xlu0 %v608, 32
          %v610 = vpop.permute.xlu0 %609
          %v611 = vadd.f32 %v608, %v610
          %612 = vrot.lane.b32.xlu0 %v611, 16
          %v613 = vpop.permute.xlu0 %612
          %v614 = vadd.f32 %v611, %v613
          %615 = vrot.lane.b32.xlu0 %v614, 8
          %v616 = vpop.permute.xlu0 %615
          %v617 = vadd.f32 %v614, %v616
          %v618 = vld [vmem:[#allocation5 + $0x1] sm:$0x1]
          %619 = vrot.lane.b32.xlu0 %v618, 64
          %v620 = vpop.permute.xlu0 %619
          %v621 = vadd.f32 %v618, %v620
          %622 = vrot.lane.b32.xlu0 %v621, 32
          %v623 = vpop.permute.xlu0 %622
          %v624 = vadd.f32 %v621, %v623
          %625 = vrot.lane.b32.xlu0 %v624, 16
          %v626 = vpop.permute.xlu0 %625
          %v627 = vadd.f32 %v624, %v626
          %628 = vrot.lane.b32.xlu0 %v627, 8
          %v629 = vpop.permute.xlu0 %628
          %v630 = vadd.f32 %v627, %v629
          %v631 = vmul.f32 %v617, 0.001953125
          %v632 = vmul.f32 %v630, 0.001953125
          %v633 = vmul.f32 %v631, %v631
          %v634 = vsub.f32 %v632, %v633
          %v635 = vadd.f32 %v634, 1e-05
          %v636 = vrsqrt.pop %v635
          %v637 = vmul.f32 %v603, %v636
          %v638 = vmul.f32 %v637, %v631
          %v639 = vsub.f32 %v604, %v638
          %s640 = smul.u32 %s28, 16
          %s641 = scalar_lea.vmem [#allocation2], %s640
          %v642 = vld [vmem:[%s641] sm:$0xff]
          %v643 = vld [vmem:[%s641 + $0x8] sm:$0xff]
          %v645 = vlaneseq
          %v646 = vshrl.u32 %v645, 7
          %v647 = vsub.s32 0, %v646
          %v648 = vrot.slane %v637, %v647
          %v650 = vmul.f32 %v648, %v642
          %v651 = vmul.f32 %v648, %v643
          %v653 = vlaneseq
          %v654 = vshrl.u32 %v653, 7
          %v655 = vsub.s32 0, %v654
          %v656 = vrot.slane %v639, %v655
          %v658 = vadd.f32 %v650, %v656
          %v659 = vadd.f32 %v651, %v656
          %660 = vst [vmem:[#allocation4] sm:$0x1] 0.0
          %661 = vst [vmem:[#allocation4 + $0x11] sm:$0x1] 0.0
          %662 = vst [vmem:[#allocation4 + $0x1] sm:$0xff] %v658
          %663 = vst [vmem:[#allocation4 + $0x9] sm:$0xff] %v659
          %v664 = vld [vmem:[#allocation4] sm:$0xff]
          %v665 = vld [vmem:[#allocation4 + $0x8] sm:$0xff]
          %v666 = vpack.c.bf16 %v665, %v664
          %v667 = vld [vmem:[#allocation10] sm:$0xf]
          %v668 = vld [vmem:[#allocation10 + $0x4] sm:$0xf]
          %v669 = vld [vmem:[#allocation10 + $0x8] sm:$0xf]
          %v670 = vld [vmem:[#allocation10 + $0xc] sm:$0xf]
          %v671 = vld [vmem:[#allocation10 + $0x10] sm:$0xf]
          %v672 = vld [vmem:[#allocation10 + $0x14] sm:$0xf]
          %v673 = vld [vmem:[#allocation10 + $0x18] sm:$0xf]
          %v674 = vld [vmem:[#allocation10 + $0x1c] sm:$0xf]
          %v675 = vld [vmem:[#allocation10 + $0x20] sm:$0xf]
          %v676 = vld [vmem:[#allocation10 + $0x24] sm:$0xf]
          %v677 = vld [vmem:[#allocation10 + $0x28] sm:$0xf]
          %v678 = vld [vmem:[#allocation10 + $0x2c] sm:$0xf]
          %v679 = vld [vmem:[#allocation10 + $0x30] sm:$0xf]
          %v680 = vld [vmem:[#allocation10 + $0x34] sm:$0xf]
          %v681 = vld [vmem:[#allocation10 + $0x38] sm:$0xf]
          %v682 = vld [vmem:[#allocation10 + $0x3c] sm:$0xf]
          %v683 = vld [vmem:[#allocation4 + $0x1] sm:$0xff]
          %v684 = vld [vmem:[#allocation4 + $0x9] sm:$0xff]
          %v685 = vpack.c.bf16 %v684, %v683
          %s686 = scalar_lea.vmem [#allocation10], 64
          %v687 = vld [vmem:[%s686] sm:$0xf]
          %v688 = vld [vmem:[%s686 + $0x4] sm:$0xf]
          %v689 = vld [vmem:[%s686 + $0x8] sm:$0xf]
          %v690 = vld [vmem:[%s686 + $0xc] sm:$0xf]
          %v691 = vld [vmem:[%s686 + $0x10] sm:$0xf]
          %v692 = vld [vmem:[%s686 + $0x14] sm:$0xf]
          %v693 = vld [vmem:[%s686 + $0x18] sm:$0xf]
          %v694 = vld [vmem:[%s686 + $0x1c] sm:$0xf]
          %v695 = vld [vmem:[%s686 + $0x20] sm:$0xf]
          %v696 = vld [vmem:[%s686 + $0x24] sm:$0xf]
          %v697 = vld [vmem:[%s686 + $0x28] sm:$0xf]
          %v698 = vld [vmem:[%s686 + $0x2c] sm:$0xf]
          %v699 = vld [vmem:[%s686 + $0x30] sm:$0xf]
          %v700 = vld [vmem:[%s686 + $0x34] sm:$0xf]
          %v701 = vld [vmem:[%s686 + $0x38] sm:$0xf]
          %v702 = vld [vmem:[%s686 + $0x3c] sm:$0xf]
          %v719 = vunpack.c.l.b16 %v687
          %v720 = vunpack.c.l.b16 %v688
          %v721 = vunpack.c.l.b16 %v689
          %v722 = vunpack.c.l.b16 %v690
          %v723 = vunpack.c.l.b16 %v691
          %v724 = vunpack.c.l.b16 %v692
          %v725 = vunpack.c.l.b16 %v693
          %v726 = vunpack.c.l.b16 %v694
          %v727 = vunpack.c.l.b16 %v695
          %v728 = vunpack.c.l.b16 %v696
          %v729 = vunpack.c.l.b16 %v697
          %v730 = vunpack.c.l.b16 %v698
          %v731 = vunpack.c.l.b16 %v699
          %v732 = vunpack.c.l.b16 %v700
          %v733 = vunpack.c.l.b16 %v701
          %v734 = vunpack.c.l.b16 %v702
          %v735 = vpack.c.b16 %v720, %v719
          %v736 = vpack.c.b16 %v722, %v721
          %v737 = vpack.c.b16 %v724, %v723
          %v738 = vpack.c.b16 %v726, %v725
          %v739 = vpack.c.b16 %v728, %v727
          %v740 = vpack.c.b16 %v730, %v729
          %v741 = vpack.c.b16 %v732, %v731
          %v742 = vpack.c.b16 %v734, %v733
          %751 = vmatprep.subr.bf16.mxu0 0
          %752 = vmatpush1.bf16.msra.mxu0 %v735
          %753 = vmatprep.subr.bf16.mxu0 0
          %754 = vmatpush1.bf16.msra.mxu0 %v736
          %755 = vmatprep.subr.bf16.mxu0 0
          %756 = vmatpush1.bf16.msra.mxu0 %v737
          %757 = vmatprep.subr.bf16.mxu0 0
          %758 = vmatpush1.bf16.msra.mxu0 %v738
          %759 = vmatprep.subr.bf16.mxu0 0
          %760 = vmatpush1.bf16.msra.mxu0 %v739
          %761 = vmatprep.subr.bf16.mxu0 0
          %762 = vmatpush1.bf16.msra.mxu0 %v740
          %763 = vmatprep.subr.bf16.mxu0 0
          %764 = vmatpush1.bf16.msra.mxu0 %v741
          %765 = vmatprep.subr.bf16.mxu0 0
          %766 = vmatpush1.bf16.msra.mxu0 %v742
          %767 = vmatprep.subr.bf16.mxu0 0
          %768 = vmatpush1.bf16.msra.mxu0 0
          %769 = vmatprep.subr.bf16.mxu0 0
          %770 = vmatpush1.bf16.msra.mxu0 0
          %771 = vmatprep.subr.bf16.mxu0 0
          %772 = vmatpush1.bf16.msra.mxu0 0
          %773 = vmatprep.subr.bf16.mxu0 0
          %774 = vmatpush1.bf16.msra.mxu0 0
          %775 = vmatprep.subr.bf16.mxu0 0
          %776 = vmatpush1.bf16.msra.mxu0 0
          %777 = vmatprep.subr.bf16.mxu0 0
          %778 = vmatpush1.bf16.msra.mxu0 0
          %779 = vmatprep.subr.bf16.mxu0 0
          %780 = vmatpush1.bf16.msra.mxu0 0
          %781 = vmatprep.subr.bf16.mxu0 0
          %782 = vmatpush1.bf16.msra.mxu0 0
          %783 = vmatprep.mubr.bf16.mxu0 0
          %784 = vmatmul.mubr.bf16.gmra.mrb[0].mxu0 %v685
          %v785 = vpop.f32.mrb[0].mxu0
          %v786 = vadd.f32 0.0, %v785
          %v787 = vpop.f32.mrb[0].mxu0
          %v788 = vpop.f32.mrb[0].mxu0
          %v789 = vadd.f32 0.0, %v788
          %v790 = vpop.f32.mrb[0].mxu0
          %791 = vdwg.mxu0
          %v808 = vunpack.c.l.b16 %v667
          %v809 = vunpack.c.l.b16 %v668
          %v810 = vunpack.c.l.b16 %v669
          %v811 = vunpack.c.l.b16 %v670
          %v812 = vunpack.c.l.b16 %v671
          %v813 = vunpack.c.l.b16 %v672
          %v814 = vunpack.c.l.b16 %v673
          %v815 = vunpack.c.l.b16 %v674
          %v816 = vunpack.c.l.b16 %v675
          %v817 = vunpack.c.l.b16 %v676
          %v818 = vunpack.c.l.b16 %v677
          %v819 = vunpack.c.l.b16 %v678
          %v820 = vunpack.c.l.b16 %v679
          %v821 = vunpack.c.l.b16 %v680
          %v822 = vunpack.c.l.b16 %v681
          %v823 = vunpack.c.l.b16 %v682
          %v824 = vpack.c.b16 %v809, %v808
          %v825 = vpack.c.b16 %v811, %v810
          %v826 = vpack.c.b16 %v813, %v812
          %v827 = vpack.c.b16 %v815, %v814
          %v828 = vpack.c.b16 %v817, %v816
          %v829 = vpack.c.b16 %v819, %v818
          %v830 = vpack.c.b16 %v821, %v820
          %v831 = vpack.c.b16 %v823, %v822
          %840 = vmatprep.subr.bf16.mxu0 0
          %841 = vmatpush1.bf16.msra.mxu0 %v824
          %842 = vmatprep.subr.bf16.mxu0 0
          %843 = vmatpush1.bf16.msra.mxu0 %v825
          %844 = vmatprep.subr.bf16.mxu0 0
          %845 = vmatpush1.bf16.msra.mxu0 %v826
          %846 = vmatprep.subr.bf16.mxu0 0
          %847 = vmatpush1.bf16.msra.mxu0 %v827
          %848 = vmatprep.subr.bf16.mxu0 0
          %849 = vmatpush1.bf16.msra.mxu0 %v828
          %850 = vmatprep.subr.bf16.mxu0 0
          %851 = vmatpush1.bf16.msra.mxu0 %v829
          %852 = vmatprep.subr.bf16.mxu0 0
          %853 = vmatpush1.bf16.msra.mxu0 %v830
          %854 = vmatprep.subr.bf16.mxu0 0
          %855 = vmatpush1.bf16.msra.mxu0 %v831
          %856 = vmatprep.subr.bf16.mxu0 0
          %857 = vmatpush1.bf16.msra.mxu0 0
          %858 = vmatprep.subr.bf16.mxu0 0
          %859 = vmatpush1.bf16.msra.mxu0 0
          %860 = vmatprep.subr.bf16.mxu0 0
          %861 = vmatpush1.bf16.msra.mxu0 0
          %862 = vmatprep.subr.bf16.mxu0 0
          %863 = vmatpush1.bf16.msra.mxu0 0
          %864 = vmatprep.subr.bf16.mxu0 0
          %865 = vmatpush1.bf16.msra.mxu0 0
          %866 = vmatprep.subr.bf16.mxu0 0
          %867 = vmatpush1.bf16.msra.mxu0 0
          %868 = vmatprep.subr.bf16.mxu0 0
          %869 = vmatpush1.bf16.msra.mxu0 0
          %870 = vmatprep.subr.bf16.mxu0 0
          %871 = vmatpush1.bf16.msra.mxu0 0
          %872 = vmatprep.mubr.bf16.mxu0 0
          %873 = vmatmul.mubr.bf16.gmra.mrb[0].mxu0 %v666
          %v874 = vpop.f32.mrb[0].mxu0
          %v875 = vadd.f32 %v786, %v874
          %v876 = vpop.f32.mrb[0].mxu0
          %v877 = vpop.f32.mrb[0].mxu0
          %v878 = vadd.f32 %v789, %v877
          %v879 = vpop.f32.mrb[0].mxu0
          %880 = vdwg.mxu0
          %v881 = vld [vmem:[#allocation4 + $0x2] sm:$0xff]
          %v882 = vld [vmem:[#allocation4 + $0xa] sm:$0xff]
          %v883 = vpack.c.bf16 %v882, %v881
          %s884 = scalar_lea.vmem [#allocation10], 128
          %v885 = vld [vmem:[%s884] sm:$0xf]
          %v886 = vld [vmem:[%s884 + $0x4] sm:$0xf]
          %v887 = vld [vmem:[%s884 + $0x8] sm:$0xf]
          %v888 = vld [vmem:[%s884 + $0xc] sm:$0xf]
          %v889 = vld [vmem:[%s884 + $0x10] sm:$0xf]
          %v890 = vld [vmem:[%s884 + $0x14] sm:$0xf]
          %v891 = vld [vmem:[%s884 + $0x18] sm:$0xf]
          %v892 = vld [vmem:[%s884 + $0x1c] sm:$0xf]
          %v893 = vld [vmem:[%s884 + $0x20] sm:$0xf]
          %v894 = vld [vmem:[%s884 + $0x24] sm:$0xf]
          %v895 = vld [vmem:[%s884 + $0x28] sm:$0xf]
          %v896 = vld [vmem:[%s884 + $0x2c] sm:$0xf]
          %v897 = vld [vmem:[%s884 + $0x30] sm:$0xf]
          %v898 = vld [vmem:[%s884 + $0x34] sm:$0xf]
          %v899 = vld [vmem:[%s884 + $0x38] sm:$0xf]
          %v900 = vld [vmem:[%s884 + $0x3c] sm:$0xf]
          %v917 = vunpack.c.l.b16 %v885
          %v918 = vunpack.c.l.b16 %v886
          %v919 = vunpack.c.l.b16 %v887
          %v920 = vunpack.c.l.b16 %v888
          %v921 = vunpack.c.l.b16 %v889
          %v922 = vunpack.c.l.b16 %v890
          %v923 = vunpack.c.l.b16 %v891
          %v924 = vunpack.c.l.b16 %v892
          %v925 = vunpack.c.l.b16 %v893
          %v926 = vunpack.c.l.b16 %v894
          %v927 = vunpack.c.l.b16 %v895
          %v928 = vunpack.c.l.b16 %v896
          %v929 = vunpack.c.l.b16 %v897
          %v930 = vunpack.c.l.b16 %v898
          %v931 = vunpack.c.l.b16 %v899
          %v932 = vunpack.c.l.b16 %v900
          %v933 = vpack.c.b16 %v918, %v917
          %v934 = vpack.c.b16 %v920, %v919
          %v935 = vpack.c.b16 %v922, %v921
          %v936 = vpack.c.b16 %v924, %v923
          %v937 = vpack.c.b16 %v926, %v925
          %v938 = vpack.c.b16 %v928, %v927
          %v939 = vpack.c.b16 %v930, %v929
          %v940 = vpack.c.b16 %v932, %v931
          %949 = vmatprep.subr.bf16.mxu0 0
          %950 = vmatpush1.bf16.msra.mxu0 %v933
          %951 = vmatprep.subr.bf16.mxu0 0
          %952 = vmatpush1.bf16.msra.mxu0 %v934
          %953 = vmatprep.subr.bf16.mxu0 0
          %954 = vmatpush1.bf16.msra.mxu0 %v935
          %955 = vmatprep.subr.bf16.mxu0 0
          %956 = vmatpush1.bf16.msra.mxu0 %v936
          %957 = vmatprep.subr.bf16.mxu0 0
          %958 = vmatpush1.bf16.msra.mxu0 %v937
          %959 = vmatprep.subr.bf16.mxu0 0
          %960 = vmatpush1.bf16.msra.mxu0 %v938
          %961 = vmatprep.subr.bf16.mxu0 0
          %962 = vmatpush1.bf16.msra.mxu0 %v939
          %963 = vmatprep.subr.bf16.mxu0 0
          %964 = vmatpush1.bf16.msra.mxu0 %v940
          %965 = vmatprep.subr.bf16.mxu0 0
          %966 = vmatpush1.bf16.msra.mxu0 0
          %967 = vmatprep.subr.bf16.mxu0 0
          %968 = vmatpush1.bf16.msra.mxu0 0
          %969 = vmatprep.subr.bf16.mxu0 0
          %970 = vmatpush1.bf16.msra.mxu0 0
          %971 = vmatprep.subr.bf16.mxu0 0
          %972 = vmatpush1.bf16.msra.mxu0 0
          %973 = vmatprep.subr.bf16.mxu0 0
          %974 = vmatpush1.bf16.msra.mxu0 0
          %975 = vmatprep.subr.bf16.mxu0 0
          %976 = vmatpush1.bf16.msra.mxu0 0
          %977 = vmatprep.subr.bf16.mxu0 0
          %978 = vmatpush1.bf16.msra.mxu0 0
          %979 = vmatprep.subr.bf16.mxu0 0
          %980 = vmatpush1.bf16.msra.mxu0 0
          %981 = vmatprep.mubr.bf16.mxu0 0
          %982 = vmatmul.mubr.bf16.gmra.mrb[0].mxu0 %v883
          %v983 = vpop.f32.mrb[0].mxu0
          %v984 = vadd.f32 0.0, %v983
          %v985 = vpop.f32.mrb[0].mxu0
          %v986 = vpop.f32.mrb[0].mxu0
          %v987 = vadd.f32 0.0, %v986
          %v988 = vpop.f32.mrb[0].mxu0
          %989 = vdwg.mxu0
          %v990 = vadd.f32 %v875, %v984
          %v991 = vadd.f32 %v878, %v987
          %s992 = scalar_lea.vmem [#allocation3], %s640
          %993 = vst [vmem:[%s992] sm:$0xff] %v990
          %994 = vst [vmem:[%s992 + $0x8] sm:$0xff] %v991
          %v995 = vld [vmem:[#allocation6] sm:$0x1]
          %v996 = vadd.f32 %v990, %v991
          %v997 = vrot.slane %v996, 4
          %v998 = vadd.f32 %v996, %v997
          %v999 = vrot.slane %v998, 2
          %v1000 = vadd.f32 %v998, %v999
          %v1001 = vrot.slane %v1000, 1
          %v1002 = vadd.f32 %v1000, %v1001
          %v1003 = vadd.f32 %v995, %v1002
          %1004 = vst [vmem:[#allocation6] sm:$0x1] %v1003
          %v1005 = vld [vmem:[#allocation6 + $0x1] sm:$0x1]
          %v1006 = vmul.f32 %v990, %v990
          %v1007 = vmul.f32 %v991, %v991
          %v1008 = vadd.f32 %v1006, %v1007
          %v1009 = vrot.slane %v1008, 4
          %v1010 = vadd.f32 %v1008, %v1009
          %v1011 = vrot.slane %v1010, 2
          %v1012 = vadd.f32 %v1010, %v1011
          %v1013 = vrot.slane %v1012, 1
          %v1014 = vadd.f32 %v1012, %v1013
          %v1015 = vadd.f32 %v1005, %v1014
          %1016 = vst [vmem:[#allocation6 + $0x1] sm:$0x1] %v1015
        $region68: #{tpu_custom_call.1} parent=47 // pred_fallthru
          _
        %p1017 = scmp.eq.s32.totalorder %s27, 2
        // Predicated region
        $region69: #{tpu_custom_call.1} parent=47 // pred_check
          %p1018 = pneg %p1017
        $region70: #{tpu_custom_call.1} parent=47 // pred_check_branch
          %1020 = sbr.rel (%p1018) target = $region72
        $region71: #{tpu_custom_call.1} parent=47 // pred_region
          %v1021 = vld [vmem:[%s5] sm:$0x1]
          %v1022 = vld [vmem:[%s6] sm:$0x1]
          %v1023 = vld [vmem:[#allocation6] sm:$0x1]
          %1024 = vrot.lane.b32.xlu0 %v1023, 64
          %v1025 = vpop.permute.xlu0 %1024
          %v1026 = vadd.f32 %v1023, %v1025
          %1027 = vrot.lane.b32.xlu0 %v1026, 32
          %v1028 = vpop.permute.xlu0 %1027
          %v1029 = vadd.f32 %v1026, %v1028
          %1030 = vrot.lane.b32.xlu0 %v1029, 16
          %v1031 = vpop.permute.xlu0 %1030
          %v1032 = vadd.f32 %v1029, %v1031
          %1033 = vrot.lane.b32.xlu0 %v1032, 8
          %v1034 = vpop.permute.xlu0 %1033
          %v1035 = vadd.f32 %v1032, %v1034
          %v1036 = vld [vmem:[#allocation6 + $0x1] sm:$0x1]
          %1037 = vrot.lane.b32.xlu0 %v1036, 64
          %v1038 = vpop.permute.xlu0 %1037
          %v1039 = vadd.f32 %v1036, %v1038
          %1040 = vrot.lane.b32.xlu0 %v1039, 32
          %v1041 = vpop.permute.xlu0 %1040
          %v1042 = vadd.f32 %v1039, %v1041
          %1043 = vrot.lane.b32.xlu0 %v1042, 16
          %v1044 = vpop.permute.xlu0 %1043
          %v1045 = vadd.f32 %v1042, %v1044
          %1046 = vrot.lane.b32.xlu0 %v1045, 8
          %v1047 = vpop.permute.xlu0 %1046
          %v1048 = vadd.f32 %v1045, %v1047
          %v1049 = vmul.f32 %v1035, 0.001953125
          %v1050 = vmul.f32 %v1048, 0.001953125
          %v1051 = vmul.f32 %v1049, %v1049
          %v1052 = vsub.f32 %v1050, %v1051
          %v1053 = vadd.f32 %v1052, 1e-05
          %v1054 = vrsqrt.pop %v1053
          %v1055 = vmul.f32 %v1021, %v1054
          %v1056 = vmul.f32 %v1055, %v1049
          %v1057 = vsub.f32 %v1022, %v1056
          %s1058 = smul.u32 %s28, 16
          %s1059 = scalar_lea.vmem [#allocation3], %s1058
          %v1060 = vld [vmem:[%s1059] sm:$0xff]
          %v1061 = vld [vmem:[%s1059 + $0x8] sm:$0xff]
          %v1063 = vlaneseq
          %v1064 = vshrl.u32 %v1063, 7
          %v1065 = vsub.s32 0, %v1064
          %v1066 = vrot.slane %v1055, %v1065
          %v1068 = vmul.f32 %v1066, %v1060
          %v1069 = vmul.f32 %v1066, %v1061
          %v1071 = vlaneseq
          %v1072 = vshrl.u32 %v1071, 7
          %v1073 = vsub.s32 0, %v1072
          %v1074 = vrot.slane %v1057, %v1073
          %v1076 = vadd.f32 %v1068, %v1074
          %v1077 = vadd.f32 %v1069, %v1074
          %v1078 = vmax.f32 %v1076, 0.0
          %v1079 = vmax.f32 %v1077, 0.0
          %1080 = vst [vmem:[%s313] sm:$0xff] %v1078
          %1081 = vst [vmem:[%s313 + $0x8] sm:$0xff] %v1079
        $region72: #{tpu_custom_call.1} parent=47 // pred_fallthru
          _
        %s1082 = sand.u32 %s195, 1
        %s1083 = scalar_lea.sflag [#allocation9], %s1082
        %s1084 = sand.u32 %s195, 1
        %s1085 = smul.addr %s1084, 16
        %s1086 = scalar_lea.vmem [#allocation12], %s1085
        // Predicated region
        $region73: #{tpu_custom_call.1} parent=47 // pred_check
          %p1087 = pneg %p205
        $region74: #{tpu_custom_call.1} parent=47 // pred_check_branch
          %1089 = sbr.rel (%p1087) target = $region76
        $region75: #{tpu_custom_call.1} parent=47 // pred_region
          %s1090 = smul.u32 2, %s28
          %s1092 = ssub.s32 256, 256
          %1093 = vsyncadd %s1083, %s1092
          %s1094 = smul.addr %s1090, 128
          %s1095 = scalar_lea.hbm %s7, %s1094
          %s1096 = sshll.u32 %s1086, 4
          %s1097 = int_to_ptr.vmem [resolvable:$true] %s1096
          %1102 = dma.vmem_to_hbm [thread:$0]  %s1097, 256, %s1095, %s1083, 128, 128, 8
        $region76: #{tpu_custom_call.1} parent=47 // pred_fallthru
          _
      $region48: #{tpu_custom_call.1} parent=5 // pred_fallthru
        _
      %p1103 = scmp.le.s32.totalorder 2, %s18
      // Predicated region
      $region77: #{tpu_custom_call.1} parent=5 // pred_check
        %p1104 = pneg %p1103
      $region78: #{tpu_custom_call.1} parent=5 // pred_check_branch
        %1106 = sbr.rel (%p1104) target = $region80
      $region79: #{tpu_custom_call.1} parent=5 // pred_region
        %s1107 = ssub.s32 %s18, 2
        // Predicated region
        $region81: #{tpu_custom_call.1} parent=79 // pred_check
          %p1108 = pneg %p211
        $region82: #{tpu_custom_call.1} parent=79 // pred_check_branch
          %1110 = sbr.rel (%p1108) target = $region84
        $region83: #{tpu_custom_call.1} parent=79 // pred_region
          %s1111 = sand.u32 %s196, 1
          %s1112 = scalar_lea.sflag [#allocation9], %s1111
          %s1113 = sand.u32 %s196, 1
          %s1114 = smul.addr %s1113, 16
          %s1115 = scalar_lea.vmem [#allocation12], %s1114
          %1116 = dma.done %s1112, 256
        $region84: #{tpu_custom_call.1} parent=79 // pred_fallthru
          _
      $region80: #{tpu_custom_call.1} parent=5 // pred_fallthru
        _
    $region6: #{tpu_custom_call.1} parent=1 // loop_footer
      %s22 = sadd.s32 1, %s18
    $region7: #{tpu_custom_call.1} parent=1 // loop_footer_branch
      %17 = sbr.rel target = $region3
    $region8: #{tpu_custom_call.1} parent=1 // loop_exit
      _
    %1117 = vsyncpa [#allocation8], 1
    %s1118 = scalar_lea.sflag [#allocation8], 1
    %1119 = vsyncpa %s1118, 1
    %1120 = vsyncpa [#allocation11], 1
    %1121 = vsyncpa [#allocation9], 1
    %s1122 = scalar_lea.sflag [#allocation9], 1
    %1123 = vsyncpa %s1122, 1

</llo_original>
